<compile_context>
chip_gen: v7x
topology: tpu7x:2x2x1
jax: 0.10.0
libtpu: 0.0.40
codegen_flags: <defaults>
</compile_context>

<pallas_src>
import jax
import jax.numpy as jnp
from jax.experimental import pallas as pl
from jax.experimental.pallas import tpu as pltpu

# SH attenuation constants (standard irradiance SH, SfSNet/DPR convention).
C1, C2, C3, C4, C5 = 0.429043, 0.511664, 0.743125, 0.886227, 0.247708
KS = 0.5          # Phong specular strength
SHININESS = 32    # Phong exponent (integer -> lax.integer_pow)
ENV_SIZE = 16     # resolution of the SH environment (sphere) image


def _sh_basis(nx, ny, nz):
    """9 attenuated SH basis functions (used by the glue + pure-JAX reference)."""
    return [
        jnp.full_like(nx, C4),
        2.0 * C2 * ny,
        2.0 * C2 * nz,
        2.0 * C2 * nx,
        2.0 * C1 * nx * ny,
        2.0 * C1 * ny * nz,
        C3 * nz * nz - C5,
        2.0 * C1 * nx * nz,
        C1 * (nx * nx - ny * ny),
    ]


# ----------------------------- glue (plain JAX) -----------------------------
def shcoeff2shimg(sh_coeff0, env_size=ENV_SIZE):
    """Render the SH coeffs of one sample onto a sphere image (3, E, E)."""
    ii, jj = jnp.meshgrid(jnp.arange(env_size), jnp.arange(env_size),
                          indexing="ij")
    x = (jj + 0.5) / env_size * 2.0 - 1.0
    y = -((ii + 0.5) / env_size * 2.0 - 1.0)
    r2 = x * x + y * y
    valid = (r2 <= 1.0).astype(jnp.float32)
    z = jnp.sqrt(jnp.clip(1.0 - r2, 0.0, 1.0))
    basis = jnp.stack(_sh_basis(x, y, z), axis=0)           # (9, E, E)
    env = jnp.einsum("kc,kij->cij", sh_coeff0, basis) * valid[None]
    return env, (x, y, z, valid)


def extract_light(env, dirs):
    """Dominant light direction + colour from the env image (approximation)."""
    x, y, z, valid = dirs
    inten = jnp.clip(env.mean(axis=0), 0.0) * valid         # (E, E)
    w = inten / (inten.sum() + 1e-6)
    ldir = jnp.stack([(x * w).sum(), (y * w).sum(), (z * w).sum()])
    ldir = ldir / (jnp.linalg.norm(ldir) + 1e-6)
    lcol = jnp.clip((env * w[None]).sum(axis=(1, 2)), 0.0)   # (3,)
    return ldir, lcol


# ------------------------------- Pallas kernel -------------------------------
def _render_loss_kernel(sh_ref, light_ref,                 # scalar prefetch (SMEM)
                        normal_ref, albedo_ref, gt_ref,    # VMEM inputs (1,3,TR,L)
                        ploss_ref, spec_ref,               # VMEM outputs
                        acc_ref):                          # VMEM scratch (TR,L)
    # grid = (P pixel tiles [parallel], B batch [arbitrary, innermost])
    b = pl.program_id(1)
    nb = pl.num_programs(1)

    nx = normal_ref[0, 0]
    ny = normal_ref[0, 1]
    nz = normal_ref[0, 2]

    @pl.when(b == 0)
    def _init():
        # per-pixel-tile loss accumulator
        acc_ref[...] = jnp.zeros_like(acc_ref)
        # Phong specular of the batch-0 normal under the dominant env light,
        # written straight into the VMEM-resident output block (no scratch).
        lx, ly, lz = light_ref[0], light_ref[1], light_ref[2]
        ndotl = nx * lx + ny * ly + nz * lz
        rz = 2.0 * ndotl * nz - lz              # reflect(L, N) . view(0,0,1)
        base = KS * jnp.maximum(rz, 0.0) ** SHININESS
        base = jnp.where(ndotl > 0.0, base, 0.0)
        for c in range(3):
            spec_ref[c] = base * light_ref[3 + c]

    # --- SH shading: k-outer / c-inner, 3 running accumulators -------------
    # k = 0 (scalar DC) and k = 1 fold into the initialization.
    h1 = 2.0 * C2 * ny
    shad = [h1 * sh_ref[b, 3 + c] + C4 * sh_ref[b, c] for c in range(3)]
    rest = (
        lambda: 2.0 * C2 * nz,                  # k = 2
        lambda: 2.0 * C2 * nx,                  # k = 3
        lambda: 2.0 * C1 * nx * ny,             # k = 4
        lambda: 2.0 * C1 * ny * nz,             # k = 5
        lambda: C3 * nz * nz - C5,              # k = 6
        lambda: 2.0 * C1 * nx * nz,             # k = 7
        lambda: C1 * (nx * nx - ny * ny),       # k = 8
    )
    for k, fn in enumerate(rest, start=2):
        hk = fn()
        for c in range(3):
            shad[c] = shad[c] + hk * sh_ref[b, 3 * k + c]

    # --- L1 contribution: sum channels in-register, one vector RMW ---------
    d = None
    for c in range(3):
        rend = albedo_ref[0, c] * shad[c] + 0.2 * spec_ref[c]
        dc = jnp.abs(rend - gt_ref[0, c])
        d = dc if d is None else d + dc
    acc_ref[...] += d

    @pl.when(b == nb - 1)
    def _finalize():
        part = jnp.sum(acc_ref[...], axis=1, keepdims=True)
        part = jnp.sum(part, axis=0, keepdims=True)          # (1, 1)
        ploss_ref[...] = part.reshape(1, 1, 1)


# --------------------------------- wrapper -----------------------------------
def _pixel_tiling(H, W):
    """Pick a lane-dense (rows, lanes, tile_rows) factorization of H*W."""
    HW = H * W
    for lane in (512, 256, 128):
        if HW % lane == 0:
            rows = HW // lane
            tile_rows = rows
            if rows > 128:                       # cap per-block VMEM footprint
                for cand in (128, 64, 32, 16, 8):
                    if rows % cand == 0:
                        tile_rows = cand
                        break
            return rows, lane, tile_rows
    # TODO(synk): odd spatial sizes fall back to the original (H, W) layout.
    return H, W, H


@jax.jit
def sh_rendering_with_phongspecular_loss(sh_coeff, normal, albedo, ground_truth):
    """sh_coeff: (B,9,3); normal/albedo/ground_truth: (B,3,H,W) float32 (NCHW)."""
    B, _, H, W = normal.shape
    R, L, TR = _pixel_tiling(H, W)
    P = R // TR

    # glue: SH env image + dominant light extraction (tiny, batch-0 only)
    env, dirs = shcoeff2shimg(sh_coeff[0])
    light_dir, light_col = extract_light(env, dirs)
    light = jnp.concatenate([light_dir, light_col]).astype(jnp.float32)  # (6,)
    sh_flat = sh_coeff.reshape(B, 27).astype(jnp.float32)

    # lane-dense pixel layout (pure reshape of contiguous memory)
    normal_r = normal.reshape(B, 3, R, L)
    albedo_r = albedo.reshape(B, 3, R, L)
    gt_r = ground_truth.reshape(B, 3, R, L)

    grid_spec = pltpu.PrefetchScalarGridSpec(
        num_scalar_prefetch=2,
        grid=(P, B),                       # pixel tiles outer, batch innermost
        in_specs=[
            pl.BlockSpec((1, 3, TR, L), lambda p, b, sh, lt: (b, 0, p, 0)),  # normal
            pl.BlockSpec((1, 3, TR, L), lambda p, b, sh, lt: (b, 0, p, 0)),  # albedo
            pl.BlockSpec((1, 3, TR, L), lambda p, b, sh, lt: (b, 0, p, 0)),  # gt
        ],
        out_specs=[
            pl.BlockSpec((1, 1, 1), lambda p, b, sh, lt: (p, 0, 0)),   # partial loss
            pl.BlockSpec((3, TR, L), lambda p, b, sh, lt: (0, p, 0)),  # specular
        ],
        scratch_shapes=[pltpu.VMEM((TR, L), jnp.float32)],
    )

    ploss, spec = pl.pallas_call(
        _render_loss_kernel,
        out_shape=(
            jax.ShapeDtypeStruct((P, 1, 1), jnp.float32),
            jax.ShapeDtypeStruct((3, R, L), jnp.float32),
        ),
        grid_spec=grid_spec,
        compiler_params=pltpu.CompilerParams(
            dimension_semantics=("parallel", "arbitrary")),
    )(sh_flat, light, normal_r, albedo_r, gt_r)

    loss = jnp.sum(ploss) / (B * 3 * H * W)
    specular = spec.reshape(3, H, W)
    return loss, specular


# ------------------------------ pure-JAX reference ---------------------------
def reference(sh_coeff, normal, albedo, ground_truth):
    env, dirs = shcoeff2shimg(sh_coeff[0])
    ldir, lcol = extract_light(env, dirs)
    nx, ny, nz = normal[:, 0], normal[:, 1], normal[:, 2]
    basis = jnp.stack(_sh_basis(nx, ny, nz), axis=1)         # (B, 9, H, W)
    shading = jnp.einsum("bkhw,bkc->bchw", basis, sh_coeff)
    sh_render = albedo * shading
    n0x, n0y, n0z = normal[0, 0], normal[0, 1], normal[0, 2]
    ndotl = n0x * ldir[0] + n0y * ldir[1] + n0z * ldir[2]
    rz = 2.0 * ndotl * n0z - ldir[2]
    base = KS * jnp.maximum(rz, 0.0) ** SHININESS
    base = jnp.where(ndotl > 0.0, base, 0.0)
    specular = base[None] * lcol[:, None, None]              # (3, H, W)
    render = sh_render + 0.2 * specular[None]
    loss = jnp.mean(jnp.abs(render - ground_truth))
    return loss, specular


# ------------------------------------ main ------------------------------------
if __name__ == "__main__":
    key = jax.random.PRNGKey(0)
    B, H, W = 2, 64, 64
    k1, k2, k3, k4 = jax.random.split(key, 4)

    normal = jax.random.normal(k1, (B, 3, H, W), jnp.float32)
    normal = normal.at[:, 2].set(jnp.abs(normal[:, 2]))      # camera-facing z
    normal = normal / (jnp.linalg.norm(normal, axis=1, keepdims=True) + 1e-6)

    albedo = jax.random.uniform(k2, (B, 3, H, W), jnp.float32)
    ground_truth = jax.random.uniform(k3, (B, 3, H, W), jnp.float32)

    sh_coeff = 0.3 * jax.random.normal(k4, (B, 9, 3), jnp.float32)
    sh_coeff = sh_coeff.at[:, 0, :].add(0.8)                 # positive ambient

    loss, specular = sh_rendering_with_phongspecular_loss(
        sh_coeff, normal, albedo, ground_truth)
    jax.block_until_ready((loss, specular))

    loss_r, spec_r = reference(sh_coeff, normal, albedo, ground_truth)
    assert specular.shape == (3, H, W)
    assert jnp.isfinite(loss)
    assert jnp.allclose(loss, loss_r, rtol=1e-4, atol=1e-5), (loss, loss_r)
    assert jnp.allclose(specular, spec_r, rtol=1e-4, atol=1e-5)

    print("KERNEL_OK")
</pallas_src>

<mosaic_0001>
module attributes {stable_mosaic.version = 11 : i64} {
  func.func @_render_loss_kernel(%arg0: i32, %arg1: i32, %arg2: memref<2x27xf32, #tpu.memory_space<smem>>, %arg3: memref<6xf32, #tpu.memory_space<smem>>, %arg4: memref<1x3x8x512xf32, #tpu.memory_space<vmem>>, %arg5: memref<1x3x8x512xf32, #tpu.memory_space<vmem>>, %arg6: memref<1x3x8x512xf32, #tpu.memory_space<vmem>>, %arg7: memref<1x1x1xf32, #tpu.memory_space<vmem>>, %arg8: memref<3x8x512xf32, #tpu.memory_space<vmem>>, %arg9: memref<8x512xf32, #tpu.memory_space<vmem>>) attributes {dimension_semantics = [#tpu.dimension_semantics<parallel>, #tpu.dimension_semantics<arbitrary>], iteration_bounds = array<i64: 1, 2>, scalar_prefetch = 2 : i64, scratch_operands = 1 : i64, tpu.core_type = #tpu.core_type<tc>, window_params = [{transform_indices = @transform_0, window_bounds = array<i64: 1, 3, 8, 512>}, {transform_indices = @transform_1, window_bounds = array<i64: 1, 3, 8, 512>}, {transform_indices = @transform_2, window_bounds = array<i64: 1, 3, 8, 512>}, {transform_indices = @transform_3, window_bounds = array<i64: 1, 1, 1>}, {transform_indices = @transform_4, window_bounds = array<i64: 3, 8, 512>}]} {
    %c0 = arith.constant 0 : index
    %c0_0 = arith.constant 0 : index
    %c0_1 = arith.constant 0 : index
    %c0_2 = arith.constant 0 : index
    %0 = vector.load %arg4[%c0, %c0_0, %c0_1, %c0_2] : memref<1x3x8x512xf32, #tpu.memory_space<vmem>>, vector<1x1x8x512xf32>
    %1 = vector.shape_cast %0 : vector<1x1x8x512xf32> to vector<8x512xf32>
    %c0_3 = arith.constant 0 : index
    %c1 = arith.constant 1 : index
    %c0_4 = arith.constant 0 : index
    %c0_5 = arith.constant 0 : index
    %2 = vector.load %arg4[%c0_3, %c1, %c0_4, %c0_5] : memref<1x3x8x512xf32, #tpu.memory_space<vmem>>, vector<1x1x8x512xf32>
    %3 = vector.shape_cast %2 : vector<1x1x8x512xf32> to vector<8x512xf32>
    %c0_6 = arith.constant 0 : index
    %c2 = arith.constant 2 : index
    %c0_7 = arith.constant 0 : index
    %c0_8 = arith.constant 0 : index
    %4 = vector.load %arg4[%c0_6, %c2, %c0_7, %c0_8] : memref<1x3x8x512xf32, #tpu.memory_space<vmem>>, vector<1x1x8x512xf32>
    %5 = vector.shape_cast %4 : vector<1x1x8x512xf32> to vector<8x512xf32>
    %c0_i32 = arith.constant 0 : i32
    %6 = arith.cmpi eq, %arg1, %c0_i32 : i32
    %7 = arith.extui %6 : i1 to i32
    %c0_i32_9 = arith.constant 0 : i32
    %8 = arith.cmpi ne, %7, %c0_i32_9 : i32
    scf.if %8 {
      %cst_65 = arith.constant 0.000000e+00 : f32
      %210 = vector.broadcast %cst_65 : f32 to vector<8x512xf32>
      %c0_66 = arith.constant 0 : index
      %c0_67 = arith.constant 0 : index
      %211 = vector.load %arg9[%c0_66, %c0_67] : memref<8x512xf32, #tpu.memory_space<vmem>>, vector<8x512xf32>
      tpu.vector_store %arg9[%c0_66, %c0_67], %210 {strides = array<i32>} : memref<8x512xf32, #tpu.memory_space<vmem>>, vector<8x512xf32>,
      %c0_68 = arith.constant 0 : index
      %212 = memref.load %arg3[%c0_68] : memref<6xf32, #tpu.memory_space<smem>>
      %c1_69 = arith.constant 1 : index
      %213 = memref.load %arg3[%c1_69] : memref<6xf32, #tpu.memory_space<smem>>
      %c2_70 = arith.constant 2 : index
      %214 = memref.load %arg3[%c2_70] : memref<6xf32, #tpu.memory_space<smem>>
      %215 = vector.broadcast %212 : f32 to vector<8x512xf32>
      %216 = arith.mulf %1, %215 : vector<8x512xf32>
      %217 = vector.broadcast %213 : f32 to vector<8x512xf32>
      %218 = arith.mulf %3, %217 : vector<8x512xf32>
      %219 = arith.addf %216, %218 : vector<8x512xf32>
      %220 = vector.broadcast %214 : f32 to vector<8x512xf32>
      %221 = arith.mulf %5, %220 : vector<8x512xf32>
      %222 = arith.addf %219, %221 : vector<8x512xf32>
      %cst_71 = arith.constant 2.000000e+00 : f32
      %223 = vector.broadcast %cst_71 : f32 to vector<8x512xf32>
      %224 = arith.mulf %223, %222 : vector<8x512xf32>
      %225 = arith.mulf %224, %5 : vector<8x512xf32>
      %226 = vector.broadcast %214 : f32 to vector<8x512xf32>
      %227 = arith.subf %225, %226 : vector<8x512xf32>
      %cst_72 = arith.constant 0.000000e+00 : f32
      %228 = vector.broadcast %cst_72 : f32 to vector<8x512xf32>
      %229 = arith.maximumf %227, %228 : vector<8x512xf32>
      %230 = arith.mulf %229, %229 : vector<8x512xf32>
      %231 = arith.mulf %230, %230 : vector<8x512xf32>
      %232 = arith.mulf %231, %231 : vector<8x512xf32>
      %233 = arith.mulf %232, %232 : vector<8x512xf32>
      %234 = arith.mulf %233, %233 : vector<8x512xf32>
      %cst_73 = arith.constant 5.000000e-01 : f32
      %235 = vector.broadcast %cst_73 : f32 to vector<8x512xf32>
      %236 = arith.mulf %235, %234 : vector<8x512xf32>
      %cst_74 = arith.constant 0.000000e+00 : f32
      %237 = vector.broadcast %cst_74 : f32 to vector<8x512xf32>
      %238 = arith.cmpf ogt, %222, %237 : vector<8x512xf32>
      %cst_75 = arith.constant 0.000000e+00 : f32
      %239 = vector.broadcast %cst_75 : f32 to vector<8x512xf32>
      %240 = arith.select %238, %236, %239 : vector<8x512xi1>, vector<8x512xf32>
      %c3_76 = arith.constant 3 : index
      %241 = memref.load %arg3[%c3_76] : memref<6xf32, #tpu.memory_space<smem>>
      %242 = vector.broadcast %241 : f32 to vector<8x512xf32>
      %243 = arith.mulf %240, %242 : vector<8x512xf32>
      %c0_77 = arith.constant 0 : index
      %c0_78 = arith.constant 0 : index
      %c0_79 = arith.constant 0 : index
      %244 = vector.load %arg8[%c0_77, %c0_78, %c0_79] : memref<3x8x512xf32, #tpu.memory_space<vmem>>, vector<1x8x512xf32>
      %245 = vector.shape_cast %244 : vector<1x8x512xf32> to vector<8x512xf32>
      %246 = vector.shape_cast %243 : vector<8x512xf32> to vector<1x8x512xf32>
      tpu.vector_store %arg8[%c0_77, %c0_78, %c0_79], %246 {strides = array<i32>} : memref<3x8x512xf32, #tpu.memory_space<vmem>>, vector<1x8x512xf32>,
      %c4_80 = arith.constant 4 : index
      %247 = memref.load %arg3[%c4_80] : memref<6xf32, #tpu.memory_space<smem>>
      %248 = vector.broadcast %247 : f32 to vector<8x512xf32>
      %249 = arith.mulf %240, %248 : vector<8x512xf32>
      %c1_81 = arith.constant 1 : index
      %c0_82 = arith.constant 0 : index
      %c0_83 = arith.constant 0 : index
      %250 = vector.load %arg8[%c1_81, %c0_82, %c0_83] : memref<3x8x512xf32, #tpu.memory_space<vmem>>, vector<1x8x512xf32>
      %251 = vector.shape_cast %250 : vector<1x8x512xf32> to vector<8x512xf32>
      %252 = vector.shape_cast %249 : vector<8x512xf32> to vector<1x8x512xf32>
      tpu.vector_store %arg8[%c1_81, %c0_82, %c0_83], %252 {strides = array<i32>} : memref<3x8x512xf32, #tpu.memory_space<vmem>>, vector<1x8x512xf32>,
      %c5_84 = arith.constant 5 : index
      %253 = memref.load %arg3[%c5_84] : memref<6xf32, #tpu.memory_space<smem>>
      %254 = vector.broadcast %253 : f32 to vector<8x512xf32>
      %255 = arith.mulf %240, %254 : vector<8x512xf32>
      %c2_85 = arith.constant 2 : index
      %c0_86 = arith.constant 0 : index
      %c0_87 = arith.constant 0 : index
      %256 = vector.load %arg8[%c2_85, %c0_86, %c0_87] : memref<3x8x512xf32, #tpu.memory_space<vmem>>, vector<1x8x512xf32>
      %257 = vector.shape_cast %256 : vector<1x8x512xf32> to vector<8x512xf32>
      %258 = vector.shape_cast %255 : vector<8x512xf32> to vector<1x8x512xf32>
      tpu.vector_store %arg8[%c2_85, %c0_86, %c0_87], %258 {strides = array<i32>} : memref<3x8x512xf32, #tpu.memory_space<vmem>>, vector<1x8x512xf32>,
    } else {
    }
    %cst = arith.constant 1.02332795 : f32
    %9 = vector.broadcast %cst : f32 to vector<8x512xf32>
    %10 = arith.mulf %9, %3 : vector<8x512xf32>
    %11 = arith.index_cast %arg1 : i32 to index
    %c3 = arith.constant 3 : index
    %12 = memref.load %arg2[%11, %c3] : memref<2x27xf32, #tpu.memory_space<smem>>
    %13 = vector.broadcast %12 : f32 to vector<8x512xf32>
    %14 = arith.mulf %10, %13 : vector<8x512xf32>
    %15 = arith.index_cast %arg1 : i32 to index
    %c0_10 = arith.constant 0 : index
    %16 = memref.load %arg2[%15, %c0_10] : memref<2x27xf32, #tpu.memory_space<smem>>
    %cst_11 = arith.constant 8.862270e-01 : f32
    %17 = arith.mulf %cst_11, %16 : f32
    %18 = vector.broadcast %17 : f32 to vector<8x512xf32>
    %19 = arith.addf %14, %18 : vector<8x512xf32>
    %20 = arith.index_cast %arg1 : i32 to index
    %c4 = arith.constant 4 : index
    %21 = memref.load %arg2[%20, %c4] : memref<2x27xf32, #tpu.memory_space<smem>>
    %22 = vector.broadcast %21 : f32 to vector<8x512xf32>
    %23 = arith.mulf %10, %22 : vector<8x512xf32>
    %24 = arith.index_cast %arg1 : i32 to index
    %c1_12 = arith.constant 1 : index
    %25 = memref.load %arg2[%24, %c1_12] : memref<2x27xf32, #tpu.memory_space<smem>>
    %cst_13 = arith.constant 8.862270e-01 : f32
    %26 = arith.mulf %cst_13, %25 : f32
    %27 = vector.broadcast %26 : f32 to vector<8x512xf32>
    %28 = arith.addf %23, %27 : vector<8x512xf32>
    %29 = arith.index_cast %arg1 : i32 to index
    %c5 = arith.constant 5 : index
    %30 = memref.load %arg2[%29, %c5] : memref<2x27xf32, #tpu.memory_space<smem>>
    %31 = vector.broadcast %30 : f32 to vector<8x512xf32>
    %32 = arith.mulf %10, %31 : vector<8x512xf32>
    %33 = arith.index_cast %arg1 : i32 to index
    %c2_14 = arith.constant 2 : index
    %34 = memref.load %arg2[%33, %c2_14] : memref<2x27xf32, #tpu.memory_space<smem>>
    %cst_15 = arith.constant 8.862270e-01 : f32
    %35 = arith.mulf %cst_15, %34 : f32
    %36 = vector.broadcast %35 : f32 to vector<8x512xf32>
    %37 = arith.addf %32, %36 : vector<8x512xf32>
    %cst_16 = arith.constant 1.02332795 : f32
    %38 = vector.broadcast %cst_16 : f32 to vector<8x512xf32>
    %39 = arith.mulf %38, %5 : vector<8x512xf32>
    %40 = arith.index_cast %arg1 : i32 to index
    %c6 = arith.constant 6 : index
    %41 = memref.load %arg2[%40, %c6] : memref<2x27xf32, #tpu.memory_space<smem>>
    %42 = vector.broadcast %41 : f32 to vector<8x512xf32>
    %43 = arith.mulf %39, %42 : vector<8x512xf32>
    %44 = arith.addf %19, %43 : vector<8x512xf32>
    %45 = arith.index_cast %arg1 : i32 to index
    %c7 = arith.constant 7 : index
    %46 = memref.load %arg2[%45, %c7] : memref<2x27xf32, #tpu.memory_space<smem>>
    %47 = vector.broadcast %46 : f32 to vector<8x512xf32>
    %48 = arith.mulf %39, %47 : vector<8x512xf32>
    %49 = arith.addf %28, %48 : vector<8x512xf32>
    %50 = arith.index_cast %arg1 : i32 to index
    %c8 = arith.constant 8 : index
    %51 = memref.load %arg2[%50, %c8] : memref<2x27xf32, #tpu.memory_space<smem>>
    %52 = vector.broadcast %51 : f32 to vector<8x512xf32>
    %53 = arith.mulf %39, %52 : vector<8x512xf32>
    %54 = arith.addf %37, %53 : vector<8x512xf32>
    %cst_17 = arith.constant 1.02332795 : f32
    %55 = vector.broadcast %cst_17 : f32 to vector<8x512xf32>
    %56 = arith.mulf %55, %1 : vector<8x512xf32>
    %57 = arith.index_cast %arg1 : i32 to index
    %c9 = arith.constant 9 : index
    %58 = memref.load %arg2[%57, %c9] : memref<2x27xf32, #tpu.memory_space<smem>>
    %59 = vector.broadcast %58 : f32 to vector<8x512xf32>
    %60 = arith.mulf %56, %59 : vector<8x512xf32>
    %61 = arith.addf %44, %60 : vector<8x512xf32>
    %62 = arith.index_cast %arg1 : i32 to index
    %c10 = arith.constant 10 : index
    %63 = memref.load %arg2[%62, %c10] : memref<2x27xf32, #tpu.memory_space<smem>>
    %64 = vector.broadcast %63 : f32 to vector<8x512xf32>
    %65 = arith.mulf %56, %64 : vector<8x512xf32>
    %66 = arith.addf %49, %65 : vector<8x512xf32>
    %67 = arith.index_cast %arg1 : i32 to index
    %c11 = arith.constant 11 : index
    %68 = memref.load %arg2[%67, %c11] : memref<2x27xf32, #tpu.memory_space<smem>>
    %69 = vector.broadcast %68 : f32 to vector<8x512xf32>
    %70 = arith.mulf %56, %69 : vector<8x512xf32>
    %71 = arith.addf %54, %70 : vector<8x512xf32>
    %cst_18 = arith.constant 0.858085989 : f32
    %72 = vector.broadcast %cst_18 : f32 to vector<8x512xf32>
    %73 = arith.mulf %72, %1 : vector<8x512xf32>
    %74 = arith.mulf %73, %3 : vector<8x512xf32>
    %75 = arith.index_cast %arg1 : i32 to index
    %c12 = arith.constant 12 : index
    %76 = memref.load %arg2[%75, %c12] : memref<2x27xf32, #tpu.memory_space<smem>>
    %77 = vector.broadcast %76 : f32 to vector<8x512xf32>
    %78 = arith.mulf %74, %77 : vector<8x512xf32>
    %79 = arith.addf %61, %78 : vector<8x512xf32>
    %80 = arith.index_cast %arg1 : i32 to index
    %c13 = arith.constant 13 : index
    %81 = memref.load %arg2[%80, %c13] : memref<2x27xf32, #tpu.memory_space<smem>>
    %82 = vector.broadcast %81 : f32 to vector<8x512xf32>
    %83 = arith.mulf %74, %82 : vector<8x512xf32>
    %84 = arith.addf %66, %83 : vector<8x512xf32>
    %85 = arith.index_cast %arg1 : i32 to index
    %c14 = arith.constant 14 : index
    %86 = memref.load %arg2[%85, %c14] : memref<2x27xf32, #tpu.memory_space<smem>>
    %87 = vector.broadcast %86 : f32 to vector<8x512xf32>
    %88 = arith.mulf %74, %87 : vector<8x512xf32>
    %89 = arith.addf %71, %88 : vector<8x512xf32>
    %cst_19 = arith.constant 0.858085989 : f32
    %90 = vector.broadcast %cst_19 : f32 to vector<8x512xf32>
    %91 = arith.mulf %90, %3 : vector<8x512xf32>
    %92 = arith.mulf %91, %5 : vector<8x512xf32>
    %93 = arith.index_cast %arg1 : i32 to index
    %c15 = arith.constant 15 : index
    %94 = memref.load %arg2[%93, %c15] : memref<2x27xf32, #tpu.memory_space<smem>>
    %95 = vector.broadcast %94 : f32 to vector<8x512xf32>
    %96 = arith.mulf %92, %95 : vector<8x512xf32>
    %97 = arith.addf %79, %96 : vector<8x512xf32>
    %98 = arith.index_cast %arg1 : i32 to index
    %c16 = arith.constant 16 : index
    %99 = memref.load %arg2[%98, %c16] : memref<2x27xf32, #tpu.memory_space<smem>>
    %100 = vector.broadcast %99 : f32 to vector<8x512xf32>
    %101 = arith.mulf %92, %100 : vector<8x512xf32>
    %102 = arith.addf %84, %101 : vector<8x512xf32>
    %103 = arith.index_cast %arg1 : i32 to index
    %c17 = arith.constant 17 : index
    %104 = memref.load %arg2[%103, %c17] : memref<2x27xf32, #tpu.memory_space<smem>>
    %105 = vector.broadcast %104 : f32 to vector<8x512xf32>
    %106 = arith.mulf %92, %105 : vector<8x512xf32>
    %107 = arith.addf %89, %106 : vector<8x512xf32>
    %cst_20 = arith.constant 7.431250e-01 : f32
    %108 = vector.broadcast %cst_20 : f32 to vector<8x512xf32>
    %109 = arith.mulf %108, %5 : vector<8x512xf32>
    %110 = arith.mulf %109, %5 : vector<8x512xf32>
    %cst_21 = arith.constant 2.477080e-01 : f32
    %111 = vector.broadcast %cst_21 : f32 to vector<8x512xf32>
    %112 = arith.subf %110, %111 : vector<8x512xf32>
    %113 = arith.index_cast %arg1 : i32 to index
    %c18 = arith.constant 18 : index
    %114 = memref.load %arg2[%113, %c18] : memref<2x27xf32, #tpu.memory_space<smem>>
    %115 = vector.broadcast %114 : f32 to vector<8x512xf32>
    %116 = arith.mulf %112, %115 : vector<8x512xf32>
    %117 = arith.addf %97, %116 : vector<8x512xf32>
    %118 = arith.index_cast %arg1 : i32 to index
    %c19 = arith.constant 19 : index
    %119 = memref.load %arg2[%118, %c19] : memref<2x27xf32, #tpu.memory_space<smem>>
    %120 = vector.broadcast %119 : f32 to vector<8x512xf32>
    %121 = arith.mulf %112, %120 : vector<8x512xf32>
    %122 = arith.addf %102, %121 : vector<8x512xf32>
    %123 = arith.index_cast %arg1 : i32 to index
    %c20 = arith.constant 20 : index
    %124 = memref.load %arg2[%123, %c20] : memref<2x27xf32, #tpu.memory_space<smem>>
    %125 = vector.broadcast %124 : f32 to vector<8x512xf32>
    %126 = arith.mulf %112, %125 : vector<8x512xf32>
    %127 = arith.addf %107, %126 : vector<8x512xf32>
    %cst_22 = arith.constant 0.858085989 : f32
    %128 = vector.broadcast %cst_22 : f32 to vector<8x512xf32>
    %129 = arith.mulf %128, %1 : vector<8x512xf32>
    %130 = arith.mulf %129, %5 : vector<8x512xf32>
    %131 = arith.index_cast %arg1 : i32 to index
    %c21 = arith.constant 21 : index
    %132 = memref.load %arg2[%131, %c21] : memref<2x27xf32, #tpu.memory_space<smem>>
    %133 = vector.broadcast %132 : f32 to vector<8x512xf32>
    %134 = arith.mulf %130, %133 : vector<8x512xf32>
    %135 = arith.addf %117, %134 : vector<8x512xf32>
    %136 = arith.index_cast %arg1 : i32 to index
    %c22 = arith.constant 22 : index
    %137 = memref.load %arg2[%136, %c22] : memref<2x27xf32, #tpu.memory_space<smem>>
    %138 = vector.broadcast %137 : f32 to vector<8x512xf32>
    %139 = arith.mulf %130, %138 : vector<8x512xf32>
    %140 = arith.addf %122, %139 : vector<8x512xf32>
    %141 = arith.index_cast %arg1 : i32 to index
    %c23 = arith.constant 23 : index
    %142 = memref.load %arg2[%141, %c23] : memref<2x27xf32, #tpu.memory_space<smem>>
    %143 = vector.broadcast %142 : f32 to vector<8x512xf32>
    %144 = arith.mulf %130, %143 : vector<8x512xf32>
    %145 = arith.addf %127, %144 : vector<8x512xf32>
    %146 = arith.mulf %1, %1 : vector<8x512xf32>
    %147 = arith.mulf %3, %3 : vector<8x512xf32>
    %148 = arith.subf %146, %147 : vector<8x512xf32>
    %cst_23 = arith.constant 4.290430e-01 : f32
    %149 = vector.broadcast %cst_23 : f32 to vector<8x512xf32>
    %150 = arith.mulf %149, %148 : vector<8x512xf32>
    %151 = arith.index_cast %arg1 : i32 to index
    %c24 = arith.constant 24 : index
    %152 = memref.load %arg2[%151, %c24] : memref<2x27xf32, #tpu.memory_space<smem>>
    %153 = vector.broadcast %152 : f32 to vector<8x512xf32>
    %154 = arith.mulf %150, %153 : vector<8x512xf32>
    %155 = arith.addf %135, %154 : vector<8x512xf32>
    %156 = arith.index_cast %arg1 : i32 to index
    %c25 = arith.constant 25 : index
    %157 = memref.load %arg2[%156, %c25] : memref<2x27xf32, #tpu.memory_space<smem>>
    %158 = vector.broadcast %157 : f32 to vector<8x512xf32>
    %159 = arith.mulf %150, %158 : vector<8x512xf32>
    %160 = arith.addf %140, %159 : vector<8x512xf32>
    %161 = arith.index_cast %arg1 : i32 to index
    %c26 = arith.constant 26 : index
    %162 = memref.load %arg2[%161, %c26] : memref<2x27xf32, #tpu.memory_space<smem>>
    %163 = vector.broadcast %162 : f32 to vector<8x512xf32>
    %164 = arith.mulf %150, %163 : vector<8x512xf32>
    %165 = arith.addf %145, %164 : vector<8x512xf32>
    %c0_24 = arith.constant 0 : index
    %c0_25 = arith.constant 0 : index
    %c0_26 = arith.constant 0 : index
    %c0_27 = arith.constant 0 : index
    %166 = vector.load %arg5[%c0_24, %c0_25, %c0_26, %c0_27] : memref<1x3x8x512xf32, #tpu.memory_space<vmem>>, vector<1x1x8x512xf32>
    %167 = vector.shape_cast %166 : vector<1x1x8x512xf32> to vector<8x512xf32>
    %168 = arith.mulf %167, %155 : vector<8x512xf32>
    %c0_28 = arith.constant 0 : index
    %c0_29 = arith.constant 0 : index
    %c0_30 = arith.constant 0 : index
    %169 = vector.load %arg8[%c0_28, %c0_29, %c0_30] : memref<3x8x512xf32, #tpu.memory_space<vmem>>, vector<1x8x512xf32>
    %170 = vector.shape_cast %169 : vector<1x8x512xf32> to vector<8x512xf32>
    %cst_31 = arith.constant 2.000000e-01 : f32
    %171 = vector.broadcast %cst_31 : f32 to vector<8x512xf32>
    %172 = arith.mulf %171, %170 : vector<8x512xf32>
    %173 = arith.addf %168, %172 : vector<8x512xf32>
    %c0_32 = arith.constant 0 : index
    %c0_33 = arith.constant 0 : index
    %c0_34 = arith.constant 0 : index
    %c0_35 = arith.constant 0 : index
    %174 = vector.load %arg6[%c0_32, %c0_33, %c0_34, %c0_35] : memref<1x3x8x512xf32, #tpu.memory_space<vmem>>, vector<1x1x8x512xf32>
    %175 = vector.shape_cast %174 : vector<1x1x8x512xf32> to vector<8x512xf32>
    %176 = arith.subf %173, %175 : vector<8x512xf32>
    %177 = math.absf %176 : vector<8x512xf32>
    %c0_36 = arith.constant 0 : index
    %c1_37 = arith.constant 1 : index
    %c0_38 = arith.constant 0 : index
    %c0_39 = arith.constant 0 : index
    %178 = vector.load %arg5[%c0_36, %c1_37, %c0_38, %c0_39] : memref<1x3x8x512xf32, #tpu.memory_space<vmem>>, vector<1x1x8x512xf32>
    %179 = vector.shape_cast %178 : vector<1x1x8x512xf32> to vector<8x512xf32>
    %180 = arith.mulf %179, %160 : vector<8x512xf32>
    %c1_40 = arith.constant 1 : index
    %c0_41 = arith.constant 0 : index
    %c0_42 = arith.constant 0 : index
    %181 = vector.load %arg8[%c1_40, %c0_41, %c0_42] : memref<3x8x512xf32, #tpu.memory_space<vmem>>, vector<1x8x512xf32>
    %182 = vector.shape_cast %181 : vector<1x8x512xf32> to vector<8x512xf32>
    %cst_43 = arith.constant 2.000000e-01 : f32
    %183 = vector.broadcast %cst_43 : f32 to vector<8x512xf32>
    %184 = arith.mulf %183, %182 : vector<8x512xf32>
    %185 = arith.addf %180, %184 : vector<8x512xf32>
    %c0_44 = arith.constant 0 : index
    %c1_45 = arith.constant 1 : index
    %c0_46 = arith.constant 0 : index
    %c0_47 = arith.constant 0 : index
    %186 = vector.load %arg6[%c0_44, %c1_45, %c0_46, %c0_47] : memref<1x3x8x512xf32, #tpu.memory_space<vmem>>, vector<1x1x8x512xf32>
    %187 = vector.shape_cast %186 : vector<1x1x8x512xf32> to vector<8x512xf32>
    %188 = arith.subf %185, %187 : vector<8x512xf32>
    %189 = math.absf %188 : vector<8x512xf32>
    %190 = arith.addf %177, %189 : vector<8x512xf32>
    %c0_48 = arith.constant 0 : index
    %c2_49 = arith.constant 2 : index
    %c0_50 = arith.constant 0 : index
    %c0_51 = arith.constant 0 : index
    %191 = vector.load %arg5[%c0_48, %c2_49, %c0_50, %c0_51] : memref<1x3x8x512xf32, #tpu.memory_space<vmem>>, vector<1x1x8x512xf32>
    %192 = vector.shape_cast %191 : vector<1x1x8x512xf32> to vector<8x512xf32>
    %193 = arith.mulf %192, %165 : vector<8x512xf32>
    %c2_52 = arith.constant 2 : index
    %c0_53 = arith.constant 0 : index
    %c0_54 = arith.constant 0 : index
    %194 = vector.load %arg8[%c2_52, %c0_53, %c0_54] : memref<3x8x512xf32, #tpu.memory_space<vmem>>, vector<1x8x512xf32>
    %195 = vector.shape_cast %194 : vector<1x8x512xf32> to vector<8x512xf32>
    %cst_55 = arith.constant 2.000000e-01 : f32
    %196 = vector.broadcast %cst_55 : f32 to vector<8x512xf32>
    %197 = arith.mulf %196, %195 : vector<8x512xf32>
    %198 = arith.addf %193, %197 : vector<8x512xf32>
    %c0_56 = arith.constant 0 : index
    %c2_57 = arith.constant 2 : index
    %c0_58 = arith.constant 0 : index
    %c0_59 = arith.constant 0 : index
    %199 = vector.load %arg6[%c0_56, %c2_57, %c0_58, %c0_59] : memref<1x3x8x512xf32, #tpu.memory_space<vmem>>, vector<1x1x8x512xf32>
    %200 = vector.shape_cast %199 : vector<1x1x8x512xf32> to vector<8x512xf32>
    %201 = arith.subf %198, %200 : vector<8x512xf32>
    %202 = math.absf %201 : vector<8x512xf32>
    %203 = arith.addf %190, %202 : vector<8x512xf32>
    %c0_60 = arith.constant 0 : index
    %c0_61 = arith.constant 0 : index
    %204 = vector.load %arg9[%c0_60, %c0_61] : memref<8x512xf32, #tpu.memory_space<vmem>>, vector<8x512xf32>
    %205 = arith.addf %204, %203 : vector<8x512xf32>
    %c0_62 = arith.constant 0 : index
    %c0_63 = arith.constant 0 : index
    %206 = vector.load %arg9[%c0_62, %c0_63] : memref<8x512xf32, #tpu.memory_space<vmem>>, vector<8x512xf32>
    tpu.vector_store %arg9[%c0_62, %c0_63], %205 {strides = array<i32>} : memref<8x512xf32, #tpu.memory_space<vmem>>, vector<8x512xf32>,
    %c1_i32 = arith.constant 1 : i32
    %207 = arith.cmpi eq, %arg1, %c1_i32 : i32
    %208 = arith.extui %207 : i1 to i32
    %c0_i32_64 = arith.constant 0 : i32
    %209 = arith.cmpi ne, %208, %c0_i32_64 : i32
    scf.if %209 {
      %c0_65 = arith.constant 0 : index
      %c0_66 = arith.constant 0 : index
      %210 = vector.load %arg9[%c0_65, %c0_66] : memref<8x512xf32, #tpu.memory_space<vmem>>, vector<8x512xf32>
      %cst_67 = arith.constant dense<0.000000e+00> : vector<8xf32>
      %211 = vector.multi_reduction <add>, %210, %cst_67 [1] : vector<8x512xf32> to vector<8xf32>
      %212 = vector.shape_cast %211 : vector<8xf32> to vector<8x1xf32>
      %cst_68 = arith.constant dense<0.000000e+00> : vector<1xf32>
      %213 = vector.multi_reduction <add>, %212, %cst_68 [0] : vector<8x1xf32> to vector<1xf32>
      %214 = vector.shape_cast %213 : vector<1xf32> to vector<1x1xf32>
      %215 = vector.shape_cast %214 : vector<1x1xf32> to vector<1x1x1xf32>
      %c0_69 = arith.constant 0 : index
      %c0_70 = arith.constant 0 : index
      %c0_71 = arith.constant 0 : index
      %216 = vector.load %arg7[%c0_69, %c0_70, %c0_71] : memref<1x1x1xf32, #tpu.memory_space<vmem>>, vector<1x1x1xf32>
      tpu.vector_store %arg7[%c0_69, %c0_70, %c0_71], %215 {strides = array<i32>} : memref<1x1x1xf32, #tpu.memory_space<vmem>>, vector<1x1x1xf32>,
    } else {
    }
    return
  }
  func.func @transform_0(%arg0: i32, %arg1: i32, %arg2: memref<2x27xf32, #tpu.memory_space<smem>>, %arg3: memref<6xf32, #tpu.memory_space<smem>>) -> (i32, i32, i32, i32) {
    %c0_i32 = arith.constant 0 : i32
    %c0_i32_0 = arith.constant 0 : i32
    %c0_i32_1 = arith.constant 0 : i32
    return %arg1, %c0_i32, %arg0, %c0_i32_0 : i32, i32, i32, i32
  }
  func.func @transform_1(%arg0: i32, %arg1: i32, %arg2: memref<2x27xf32, #tpu.memory_space<smem>>, %arg3: memref<6xf32, #tpu.memory_space<smem>>) -> (i32, i32, i32, i32) {
    %c0_i32 = arith.constant 0 : i32
    %c0_i32_0 = arith.constant 0 : i32
    %c0_i32_1 = arith.constant 0 : i32
    return %arg1, %c0_i32, %arg0, %c0_i32_0 : i32, i32, i32, i32
  }
  func.func @transform_2(%arg0: i32, %arg1: i32, %arg2: memref<2x27xf32, #tpu.memory_space<smem>>, %arg3: memref<6xf32, #tpu.memory_space<smem>>) -> (i32, i32, i32, i32) {
    %c0_i32 = arith.constant 0 : i32
    %c0_i32_0 = arith.constant 0 : i32
    %c0_i32_1 = arith.constant 0 : i32
    return %arg1, %c0_i32, %arg0, %c0_i32_0 : i32, i32, i32, i32
  }
  func.func @transform_3(%arg0: i32, %arg1: i32, %arg2: memref<2x27xf32, #tpu.memory_space<smem>>, %arg3: memref<6xf32, #tpu.memory_space<smem>>) -> (i32, i32, i32) {
    %c0_i32 = arith.constant 0 : i32
    %c0_i32_0 = arith.constant 0 : i32
    %c0_i32_1 = arith.constant 0 : i32
    return %arg0, %c0_i32, %c0_i32_0 : i32, i32, i32
  }
  func.func @transform_4(%arg0: i32, %arg1: i32, %arg2: memref<2x27xf32, #tpu.memory_space<smem>>, %arg3: memref<6xf32, #tpu.memory_space<smem>>) -> (i32, i32, i32) {
    %c0_i32 = arith.constant 0 : i32
    %c0_i32_0 = arith.constant 0 : i32
    %c0_i32_1 = arith.constant 0 : i32
    return %c0_i32, %arg0, %c0_i32_0 : i32, i32, i32
  }
}

</mosaic_0001>

<llo_original>
// kernel: sh_rendering_with_phongspecular_loss.1
$region0: #{sh_rendering_with_phongspecular_loss.1}
  #allocation0 [shape = 'u32[]', space=smem, size = 0x4, offset = 0x4, fixed_abs, tag = 'smem constant byte address 0x4 - core index']
  #allocation1 [shape = 'u32[144,128]{1,0:T(1,128)}', space=vmem, size = 0x12000, scoped, tag = 'internal scratch']
  #allocation2 [shape = 'f32[8,512]{1,0:T(8,128)}', space=vmem, size = 0x4000, scoped, tag = 'scratch operand']
  #allocation3 [shape = 's32[1]{0}', space=sflag, size = 0x4, scoped, tag = 'scoped memory for sh_rendering_with_phongspecular_loss.1']
  #allocation4 [shape = 'u8[1024]{0}', space=smem, size = 0x400, scoped, tag = 'prefetched SMEM operand 0']
  #allocation5 [shape = 'u8[512]{0}', space=smem, size = 0x200, scoped, tag = 'prefetched SMEM operand 1']
  %s0 = inlined_call_operand.vmem [shape: f32[2,27], index: 0, kind: input, shape index: {}]
  %s1 = inlined_call_operand.vmem [shape: f32[6], index: 1, kind: input, shape index: {}]
  %s2 = inlined_call_operand.vmem [shape: f32[2,3,8,512], index: 2, kind: input, shape index: {}]
  %s3 = inlined_call_operand.vmem [shape: f32[2,3,8,512], index: 3, kind: input, shape index: {}]
  %s4 = inlined_call_operand.vmem [shape: f32[2,3,8,512], index: 4, kind: input, shape index: {}]
  %s5 = inlined_call_operand.hbm [shape: f32[1,1,1], index: 5, kind: output, shape index: {0}]
  %s6 = inlined_call_operand.vmem [shape: f32[3,8,512], index: 6, kind: output, shape index: {1}]
  %7 = xla_tuple %s5, %s6
  %s8 = sld [smem:[#allocation0]]
  $region61: #{sh_rendering_with_phongspecular_loss.1} parent=0
    _
  %s10 = ssub.s32 1, %s8
  %s11 = scalar_select 0, %s10, %s8
  %s12 = sshll.u32 %s0, 4
  %s13 = int_to_ptr.vmem [resolvable:$true] %s12
  %15 = dma.vmem_to_smem %s13, 32, [#allocation4], [#allocation3]
  %s16 = sshll.u32 %s1, 4
  %s17 = int_to_ptr.vmem [resolvable:$true] %s16
  %19 = dma.vmem_to_smem %s17, 16, [#allocation5], [#allocation3]
  %20 = dma.done [#allocation3], 48
  %21 = sfence
  $region1: #{sh_rendering_with_phongspecular_loss.1} parent=0
    #allocation6 [shape = 'u8[512]{0}', space=vmem, size = 0x400, scoped, tag = 'output window, operand 0, single buffered']
    #allocation7 [shape = 's32[2]{0}', space=sflag, size = 0x8, scoped, tag = 'scoped memory for sh_rendering_with_phongspecular_loss.1']
    %22 = vsyncpa [#allocation7], 0
    loop: start=0, step=1, limit=4
    $region2: #{sh_rendering_with_phongspecular_loss.1} parent=1 // loop_pre_header
      _
    $region3: #{sh_rendering_with_phongspecular_loss.1} parent=1 // loop_header
      %s24 = sphi 0, %s28
      %p25 = scmp.ge.s32.totalorder %s24, 4
      %s31 = sphi 0, %s43
      %s32 = sphi 0, %s39
      %s33 = sphi 0, %s31
      %s34 = sphi 0, %s32
      %s35 = sphi 0, %s33
      %s36 = sphi 0, %s34
      %s48 = sphi 0, %s50
      %s51 = sphi 0, %s48
      %s52 = sphi 0, %s51
      %s68 = sphi 0, %s52
      %s76 = sphi 0, %s78
      %s79 = sphi 0, %s76
      %s80 = sphi 0, %s79
      %s96 = sphi 0, %s80
      %s104 = sphi 0, %s106
      %s107 = sphi 0, %s104
      %s108 = sphi 0, %s107
      %s124 = sphi 0, %s108
      %s130 = sphi 0, %s132
      %s133 = sphi 0, %s130
      %s134 = sphi 0, %s133
      %s150 = sphi 0, %s134
      %s156 = sphi 0, %s158
      %s159 = sphi 0, %s156
      %s160 = sphi 0, %s159
      %s176 = sphi 0, %s160
    $region4: #{sh_rendering_with_phongspecular_loss.1} parent=1 // loop_header_branch
      %27 = sbr.rel (%p25) target = $region8
    $region5: #{sh_rendering_with_phongspecular_loss.1} parent=1 // loop_body
      %s29 = ssub.s32 %s24, 1
      %s30 = ssub.s32 %s24, 2
      %s37 = sadd.s32 1, %s32
      %p38 = scmp.ge.s32.totalorder %s37, 2
      %s39 = scalar_select %p38, 0, %s37
      %s40 = sadd.s32 1, %s31
      %s41 = scalar_select %p38, %s40, %s31
      %p42 = scmp.ge.s32.totalorder %s41, 1
      %s43 = scalar_select %p42, 0, %s41
      %s44 = ssub.s32 %s32, %s39
      %s45 = ssub.s32 %s31, %s43
      %s46 = sor.u32 %s44, %s45
      %p47 = scmp.eq.s32.totalorder %s46, 0
      %s49 = sadd.s32 %s48, 1
      %s50 = scalar_select %p47, %s48, %s49
      %p53 = pneg %p47
      %p54 = scmp.eq.s32.totalorder %s24, 1
      %p55 = por %p53, %p54
      %p56 = scmp.ne.s32.totalorder %s48, %s51
      %p57 = scmp.eq.s32.totalorder %s24, 0
      %p58 = por %p56, %p57
      %p59 = scmp.ne.s32.totalorder %s48, %s51
      %p60 = scmp.eq.s32.totalorder %s29, 1
      %p61 = por %p59, %p60
      %p62 = scmp.ne.s32.totalorder %s51, %s52
      %p63 = scmp.eq.s32.totalorder %s29, 0
      %p64 = por %p62, %p63
      %p65 = scmp.ne.s32.totalorder %s51, %s52
      %p66 = scmp.eq.s32.totalorder %s30, 1
      %p67 = por %p65, %p66
      %p69 = scmp.ne.s32.totalorder %s52, %s68
      %p70 = scmp.eq.s32.totalorder %s30, 0
      %p71 = por %p69, %p70
      %s72 = ssub.s32 %s32, %s39
      %s73 = ssub.s32 %s31, %s43
      %s74 = sor.u32 %s72, %s73
      %p75 = scmp.eq.s32.totalorder %s74, 0
      %s77 = sadd.s32 %s76, 1
      %s78 = scalar_select %p75, %s76, %s77
      %p81 = pneg %p75
      %p82 = scmp.eq.s32.totalorder %s24, 1
      %p83 = por %p81, %p82
      %p84 = scmp.ne.s32.totalorder %s76, %s79
      %p85 = scmp.eq.s32.totalorder %s24, 0
      %p86 = por %p84, %p85
      %p87 = scmp.ne.s32.totalorder %s76, %s79
      %p88 = scmp.eq.s32.totalorder %s29, 1
      %p89 = por %p87, %p88
      %p90 = scmp.ne.s32.totalorder %s79, %s80
      %p91 = scmp.eq.s32.totalorder %s29, 0
      %p92 = por %p90, %p91
      %p93 = scmp.ne.s32.totalorder %s79, %s80
      %p94 = scmp.eq.s32.totalorder %s30, 1
      %p95 = por %p93, %p94
      %p97 = scmp.ne.s32.totalorder %s80, %s96
      %p98 = scmp.eq.s32.totalorder %s30, 0
      %p99 = por %p97, %p98
      %s100 = ssub.s32 %s32, %s39
      %s101 = ssub.s32 %s31, %s43
      %s102 = sor.u32 %s100, %s101
      %p103 = scmp.eq.s32.totalorder %s102, 0
      %s105 = sadd.s32 %s104, 1
      %s106 = scalar_select %p103, %s104, %s105
      %p109 = pneg %p103
      %p110 = scmp.eq.s32.totalorder %s24, 1
      %p111 = por %p109, %p110
      %p112 = scmp.ne.s32.totalorder %s104, %s107
      %p113 = scmp.eq.s32.totalorder %s24, 0
      %p114 = por %p112, %p113
      %p115 = scmp.ne.s32.totalorder %s104, %s107
      %p116 = scmp.eq.s32.totalorder %s29, 1
      %p117 = por %p115, %p116
      %p118 = scmp.ne.s32.totalorder %s107, %s108
      %p119 = scmp.eq.s32.totalorder %s29, 0
      %p120 = por %p118, %p119
      %p121 = scmp.ne.s32.totalorder %s107, %s108
      %p122 = scmp.eq.s32.totalorder %s30, 1
      %p123 = por %p121, %p122
      %p125 = scmp.ne.s32.totalorder %s108, %s124
      %p126 = scmp.eq.s32.totalorder %s30, 0
      %p127 = por %p125, %p126
      %s128 = ssub.s32 %s31, %s43
      %p129 = scmp.eq.s32.totalorder %s128, 0
      %s131 = sadd.s32 %s130, 1
      %s132 = scalar_select %p129, %s130, %s131
      %p135 = pneg %p129
      %p136 = scmp.eq.s32.totalorder %s24, 1
      %p137 = por %p135, %p136
      %p138 = scmp.ne.s32.totalorder %s130, %s133
      %p139 = scmp.eq.s32.totalorder %s24, 0
      %p140 = por %p138, %p139
      %p141 = scmp.ne.s32.totalorder %s130, %s133
      %p142 = scmp.eq.s32.totalorder %s29, 1
      %p143 = por %p141, %p142
      %p144 = scmp.ne.s32.totalorder %s133, %s134
      %p145 = scmp.eq.s32.totalorder %s29, 0
      %p146 = por %p144, %p145
      %p147 = scmp.ne.s32.totalorder %s133, %s134
      %p148 = scmp.eq.s32.totalorder %s30, 1
      %p149 = por %p147, %p148
      %p151 = scmp.ne.s32.totalorder %s134, %s150
      %p152 = scmp.eq.s32.totalorder %s30, 0
      %p153 = por %p151, %p152
      %s154 = ssub.s32 %s31, %s43
      %p155 = scmp.eq.s32.totalorder %s154, 0
      %s157 = sadd.s32 %s156, 1
      %s158 = scalar_select %p155, %s156, %s157
      %p161 = pneg %p155
      %p162 = scmp.eq.s32.totalorder %s24, 1
      %p163 = por %p161, %p162
      %p164 = scmp.ne.s32.totalorder %s156, %s159
      %p165 = scmp.eq.s32.totalorder %s24, 0
      %p166 = por %p164, %p165
      %p167 = scmp.ne.s32.totalorder %s156, %s159
      %p168 = scmp.eq.s32.totalorder %s29, 1
      %p169 = por %p167, %p168
      %p170 = scmp.ne.s32.totalorder %s159, %s160
      %p171 = scmp.eq.s32.totalorder %s29, 0
      %p172 = por %p170, %p171
      %p173 = scmp.ne.s32.totalorder %s159, %s160
      %p174 = scmp.eq.s32.totalorder %s30, 1
      %p175 = por %p173, %p174
      %p177 = scmp.ne.s32.totalorder %s160, %s176
      %p178 = scmp.eq.s32.totalorder %s30, 0
      %p179 = por %p177, %p178
      %p180 = scmp.le.s32.totalorder 1, %s24
      %p181 = scmp.lt.s32.totalorder %s24, 3
      %p182 = pnand %p180, %p181
      %p183 = pneg %p182
      // Predicated region
      $region9: #{sh_rendering_with_phongspecular_loss.1} parent=5 // pred_check
        _
      $region10: #{sh_rendering_with_phongspecular_loss.1} parent=5 // pred_check_branch
        %185 = sbr.rel (%p182) target = $region12
      $region11: #{sh_rendering_with_phongspecular_loss.1} parent=5 // pred_region
        %s186 = ssub.s32 %s24, 1
      $region12: #{sh_rendering_with_phongspecular_loss.1} parent=5 // pred_fallthru
        _
      %p187 = scmp.lt.s32.totalorder %s24, 2
      // Predicated region
      $region13: #{sh_rendering_with_phongspecular_loss.1} parent=5 // pred_check
        %p188 = pneg %p187
      $region14: #{sh_rendering_with_phongspecular_loss.1} parent=5 // pred_check_branch
        %190 = sbr.rel (%p188) target = $region16
      $region15: #{sh_rendering_with_phongspecular_loss.1} parent=5 // pred_region
        // Predicated region
        $region17: #{sh_rendering_with_phongspecular_loss.1} parent=15 // pred_check
          %p191 = pneg %p58
        $region18: #{sh_rendering_with_phongspecular_loss.1} parent=15 // pred_check_branch
          %193 = sbr.rel (%p191) target = $region20
        $region19: #{sh_rendering_with_phongspecular_loss.1} parent=15 // pred_region
          %p194 = scmp.lt.s32.totalorder %s32, 1
          %s195 = scalar_select %p194, %s32, 1
          %p196 = scmp.lt.s32.totalorder %s31, 0
          %s197 = scalar_select %p196, %s31, 0
          %s198 = smul.addr %s197, 4
          %s199 = smul.addr %s195, 12
          %s200 = sadd.s32 %s198, %s199
          %s201 = smul.addr %s200, 8
          %s202 = scalar_lea.vmem %s2, %s201
        $region20: #{sh_rendering_with_phongspecular_loss.1} parent=15 // pred_fallthru
          _
        // Predicated region
        $region21: #{sh_rendering_with_phongspecular_loss.1} parent=15 // pred_check
          %p203 = pneg %p86
        $region22: #{sh_rendering_with_phongspecular_loss.1} parent=15 // pred_check_branch
          %205 = sbr.rel (%p203) target = $region24
        $region23: #{sh_rendering_with_phongspecular_loss.1} parent=15 // pred_region
          %p206 = scmp.lt.s32.totalorder %s32, 1
          %s207 = scalar_select %p206, %s32, 1
          %p208 = scmp.lt.s32.totalorder %s31, 0
          %s209 = scalar_select %p208, %s31, 0
          %s210 = smul.addr %s209, 4
          %s211 = smul.addr %s207, 12
          %s212 = sadd.s32 %s210, %s211
          %s213 = smul.addr %s212, 8
          %s214 = scalar_lea.vmem %s3, %s213
        $region24: #{sh_rendering_with_phongspecular_loss.1} parent=15 // pred_fallthru
          _
        // Predicated region
        $region25: #{sh_rendering_with_phongspecular_loss.1} parent=15 // pred_check
          %p215 = pneg %p114
        $region26: #{sh_rendering_with_phongspecular_loss.1} parent=15 // pred_check_branch
          %217 = sbr.rel (%p215) target = $region28
        $region27: #{sh_rendering_with_phongspecular_loss.1} parent=15 // pred_region
          %p218 = scmp.lt.s32.totalorder %s32, 1
          %s219 = scalar_select %p218, %s32, 1
          %p220 = scmp.lt.s32.totalorder %s31, 0
          %s221 = scalar_select %p220, %s31, 0
          %s222 = smul.addr %s221, 4
          %s223 = smul.addr %s219, 12
          %s224 = sadd.s32 %s222, %s223
          %s225 = smul.addr %s224, 8
          %s226 = scalar_lea.vmem %s4, %s225
        $region28: #{sh_rendering_with_phongspecular_loss.1} parent=15 // pred_fallthru
          _
      $region16: #{sh_rendering_with_phongspecular_loss.1} parent=5 // pred_fallthru
        _
      %p227 = scmp.le.s32.totalorder 1, %s24
      %p228 = scmp.lt.s32.totalorder %s24, 3
      %p229 = pnand %p227, %p228
      %p230 = pneg %p229
      // Predicated region
      $region29: #{sh_rendering_with_phongspecular_loss.1} parent=5 // pred_check
        _
      $region30: #{sh_rendering_with_phongspecular_loss.1} parent=5 // pred_check_branch
        %232 = sbr.rel (%p229) target = $region32
      $region31: #{sh_rendering_with_phongspecular_loss.1} parent=5 // pred_region
        %s233 = ssub.s32 %s24, 1
        %p234 = scmp.lt.s32.totalorder %s34, 1
        %s235 = scalar_select %p234, %s34, 1
        %p236 = scmp.lt.s32.totalorder %s33, 0
        %s237 = scalar_select %p236, %s33, 0
        %s238 = smul.addr %s237, 4
        %s239 = smul.addr %s235, 12
        %s240 = sadd.s32 %s238, %s239
        %s241 = smul.addr %s240, 8
        %s242 = scalar_lea.vmem %s2, %s241
        %p243 = pneg %p64
        %p244 = pneg %p61
        %p245 = scmp.lt.s32.totalorder %s34, 1
        %s246 = scalar_select %p245, %s34, 1
        %p247 = scmp.lt.s32.totalorder %s33, 0
        %s248 = scalar_select %p247, %s33, 0
        %s249 = smul.addr %s248, 4
        %s250 = smul.addr %s246, 12
        %s251 = sadd.s32 %s249, %s250
        %s252 = smul.addr %s251, 8
        %s253 = scalar_lea.vmem %s3, %s252
        %p254 = pneg %p92
        %p255 = pneg %p89
        %p256 = scmp.lt.s32.totalorder %s34, 1
        %s257 = scalar_select %p256, %s34, 1
        %p258 = scmp.lt.s32.totalorder %s33, 0
        %s259 = scalar_select %p258, %s33, 0
        %s260 = smul.addr %s259, 4
        %s261 = smul.addr %s257, 12
        %s262 = sadd.s32 %s260, %s261
        %s263 = smul.addr %s262, 8
        %s264 = scalar_lea.vmem %s4, %s263
        %p265 = pneg %p120
        %p266 = pneg %p117
        %p267 = pneg %p146
        %p268 = pneg %p143
        %p269 = pneg %p172
        %p270 = pneg %p169
        %p271 = scmp.lt.s32.totalorder %s33, 0
        %s272 = scalar_select %p271, %s33, 0
        %s273 = smul.addr %s272, 4
        %s274 = smul.addr %s273, 8
        %s275 = scalar_lea.vmem %s6, %s274
        %p276 = scmp.lt.s32.totalorder %s34, 1
        %s277 = scalar_select %p276, %s34, 1
        %p278 = scmp.lt.s32.totalorder %s33, 0
        %s279 = scalar_select %p278, %s33, 0
        %s280 = smul.addr %s279, 4
        %s281 = smul.addr %s277, 12
        %s282 = sadd.s32 %s280, %s281
        %s283 = smul.addr %s282, 8
        %s284 = scalar_lea.vmem %s2, %s283
        %p285 = scmp.lt.s32.totalorder %s34, 1
        %s286 = scalar_select %p285, %s34, 1
        %p287 = scmp.lt.s32.totalorder %s33, 0
        %s288 = scalar_select %p287, %s33, 0
        %s289 = smul.addr %s288, 4
        %s290 = smul.addr %s286, 12
        %s291 = sadd.s32 %s289, %s290
        %s292 = smul.addr %s291, 8
        %s293 = scalar_lea.vmem %s3, %s292
        %p294 = scmp.lt.s32.totalorder %s34, 1
        %s295 = scalar_select %p294, %s34, 1
        %p296 = scmp.lt.s32.totalorder %s33, 0
        %s297 = scalar_select %p296, %s33, 0
        %s298 = smul.addr %s297, 4
        %s299 = smul.addr %s295, 12
        %s300 = sadd.s32 %s298, %s299
        %s301 = smul.addr %s300, 8
        %s302 = scalar_lea.vmem %s4, %s301
        %p303 = scmp.lt.s32.totalorder %s33, 0
        %s304 = scalar_select %p303, %s33, 0
        %s305 = smul.addr %s304, 4
        %s306 = smul.addr %s305, 8
        %s307 = scalar_lea.vmem %s6, %s306
        %v308 = vld [vmem:[%s284] sm:$0xff]
        %v309 = vld [vmem:[%s284 + $0x8] sm:$0xff]
        %v310 = vld [vmem:[%s284 + $0x10] sm:$0xff]
        %v311 = vld [vmem:[%s284 + $0x18] sm:$0xff]
        %s312 = scalar_lea.vmem %s284, 32
        %v313 = vld [vmem:[%s312] sm:$0xff]
        %v314 = vld [vmem:[%s312 + $0x8] sm:$0xff]
        %v315 = vld [vmem:[%s312 + $0x10] sm:$0xff]
        %v316 = vld [vmem:[%s312 + $0x18] sm:$0xff]
        %s317 = scalar_lea.vmem %s284, 64
        %v318 = vld [vmem:[%s317] sm:$0xff]
        %v319 = vld [vmem:[%s317 + $0x8] sm:$0xff]
        %v320 = vld [vmem:[%s317 + $0x10] sm:$0xff]
        %v321 = vld [vmem:[%s317 + $0x18] sm:$0xff]
        %p322 = scmp.eq.s32.totalorder %s34, 0
        // Predicated region
        $region33: #{sh_rendering_with_phongspecular_loss.1} parent=31 // pred_check
          %p323 = pneg %p322
        $region34: #{sh_rendering_with_phongspecular_loss.1} parent=31 // pred_check_branch
          %325 = sbr.rel (%p323) target = $region36
        $region35: #{sh_rendering_with_phongspecular_loss.1} parent=31 // pred_region
          %326 = vst [vmem:[#allocation2] sm:$0xff] 0.0
          %327 = vst [vmem:[#allocation2 + $0x8] sm:$0xff] 0.0
          %328 = vst [vmem:[#allocation2 + $0x10] sm:$0xff] 0.0
          %329 = vst [vmem:[#allocation2 + $0x18] sm:$0xff] 0.0
          %s330 = sld [smem:[#allocation5]]
          %s331 = sld [smem:[#allocation5 + $0x1]]
          %s332 = sld [smem:[#allocation5 + $0x2]]
          %v333 = vstv %s330
          %v334 = vmul.f32 %v308, %v333
          %v335 = vmul.f32 %v309, %v333
          %v336 = vmul.f32 %v310, %v333
          %v337 = vmul.f32 %v311, %v333
          %v338 = vstv %s331
          %v339 = vmul.f32 %v313, %v338
          %v340 = vmul.f32 %v314, %v338
          %v341 = vmul.f32 %v315, %v338
          %v342 = vmul.f32 %v316, %v338
          %v343 = vadd.f32 %v334, %v339
          %v344 = vadd.f32 %v335, %v340
          %v345 = vadd.f32 %v336, %v341
          %v346 = vadd.f32 %v337, %v342
          %v347 = vstv %s332
          %v348 = vmul.f32 %v318, %v347
          %v349 = vmul.f32 %v319, %v347
          %v350 = vmul.f32 %v320, %v347
          %v351 = vmul.f32 %v321, %v347
          %v352 = vadd.f32 %v343, %v348
          %v353 = vadd.f32 %v344, %v349
          %v354 = vadd.f32 %v345, %v350
          %v355 = vadd.f32 %v346, %v351
          %v356 = vmul.f32 %v352, 2.0
          %v357 = vmul.f32 %v353, 2.0
          %v358 = vmul.f32 %v354, 2.0
          %v359 = vmul.f32 %v355, 2.0
          %v360 = vmul.f32 %v356, %v318
          %v361 = vmul.f32 %v357, %v319
          %v362 = vmul.f32 %v358, %v320
          %v363 = vmul.f32 %v359, %v321
          %v364 = vsub.f32 %v360, %v347
          %v365 = vsub.f32 %v361, %v347
          %v366 = vsub.f32 %v362, %v347
          %v367 = vsub.f32 %v363, %v347
          %v368 = vmax.f32 %v364, 0.0
          %v369 = vmax.f32 %v365, 0.0
          %v370 = vmax.f32 %v366, 0.0
          %v371 = vmax.f32 %v367, 0.0
          %v372 = vmul.f32 %v368, %v368
          %v373 = vmul.f32 %v369, %v369
          %v374 = vmul.f32 %v370, %v370
          %v375 = vmul.f32 %v371, %v371
          %v376 = vmul.f32 %v372, %v372
          %v377 = vmul.f32 %v373, %v373
          %v378 = vmul.f32 %v374, %v374
          %v379 = vmul.f32 %v375, %v375
          %v380 = vmul.f32 %v376, %v376
          %v381 = vmul.f32 %v377, %v377
          %v382 = vmul.f32 %v378, %v378
          %v383 = vmul.f32 %v379, %v379
          %v384 = vmul.f32 %v380, %v380
          %v385 = vmul.f32 %v381, %v381
          %v386 = vmul.f32 %v382, %v382
          %v387 = vmul.f32 %v383, %v383
          %v388 = vmul.f32 %v384, %v384
          %v389 = vmul.f32 %v385, %v385
          %v390 = vmul.f32 %v386, %v386
          %v391 = vmul.f32 %v387, %v387
          %v392 = vmul.f32 %v388, 0.5
          %v393 = vmul.f32 %v389, 0.5
          %v394 = vmul.f32 %v390, 0.5
          %v395 = vmul.f32 %v391, 0.5
          %vm396 = vcmp.gt.f32.partialorder %v352, 0.0
          %vm397 = vcmp.gt.f32.partialorder %v353, 0.0
          %vm398 = vcmp.gt.f32.partialorder %v354, 0.0
          %vm399 = vcmp.gt.f32.partialorder %v355, 0.0
          %v400 = vsel %vm396, %v392, 0.0
          %v401 = vsel %vm397, %v393, 0.0
          %v402 = vsel %vm398, %v394, 0.0
          %v403 = vsel %vm399, %v395, 0.0
          %s404 = sld [smem:[#allocation5 + $0x3]]
          %v405 = vstv %s404
          %v406 = vmul.f32 %v400, %v405
          %v407 = vmul.f32 %v401, %v405
          %v408 = vmul.f32 %v402, %v405
          %v409 = vmul.f32 %v403, %v405
          %410 = vst [vmem:[%s307] sm:$0xff] %v406
          %411 = vst [vmem:[%s307 + $0x8] sm:$0xff] %v407
          %412 = vst [vmem:[%s307 + $0x10] sm:$0xff] %v408
          %413 = vst [vmem:[%s307 + $0x18] sm:$0xff] %v409
          %s414 = sld [smem:[#allocation5 + $0x4]]
          %v415 = vstv %s414
          %v416 = vmul.f32 %v400, %v415
          %v417 = vmul.f32 %v401, %v415
          %v418 = vmul.f32 %v402, %v415
          %v419 = vmul.f32 %v403, %v415
          %s420 = scalar_lea.vmem %s307, 32
          %421 = vst [vmem:[%s420] sm:$0xff] %v416
          %422 = vst [vmem:[%s420 + $0x8] sm:$0xff] %v417
          %423 = vst [vmem:[%s420 + $0x10] sm:$0xff] %v418
          %424 = vst [vmem:[%s420 + $0x18] sm:$0xff] %v419
          %s425 = sld [smem:[#allocation5 + $0x5]]
          %v426 = vstv %s425
          %v427 = vmul.f32 %v400, %v426
          %v428 = vmul.f32 %v401, %v426
          %v429 = vmul.f32 %v402, %v426
          %v430 = vmul.f32 %v403, %v426
          %s431 = scalar_lea.vmem %s307, 64
          %432 = vst [vmem:[%s431] sm:$0xff] %v427
          %433 = vst [vmem:[%s431 + $0x8] sm:$0xff] %v428
          %434 = vst [vmem:[%s431 + $0x10] sm:$0xff] %v429
          %435 = vst [vmem:[%s431 + $0x18] sm:$0xff] %v430
        $region36: #{sh_rendering_with_phongspecular_loss.1} parent=31 // pred_fallthru
          _
        %v436 = vmul.f32 %v313, 1.023328
        %v437 = vmul.f32 %v314, 1.023328
        %v438 = vmul.f32 %v315, 1.023328
        %v439 = vmul.f32 %v316, 1.023328
        %s440 = smul.u32 %s34, 128
        %s441 = sadd.s32 %s440, 3
        %s442 = sld [smem:[#allocation4 + %s441]]
        %v443 = vstv %s442
        %v444 = vmul.f32 %v436, %v443
        %v445 = vmul.f32 %v437, %v443
        %v446 = vmul.f32 %v438, %v443
        %v447 = vmul.f32 %v439, %v443
        %s448 = sld [smem:[#allocation4 + %s440]]
        %s449 = smul.f32 %s448, 0.886227
        %v450 = vstv %s449
        %v451 = vadd.f32 %v444, %v450
        %v452 = vadd.f32 %v445, %v450
        %v453 = vadd.f32 %v446, %v450
        %v454 = vadd.f32 %v447, %v450
        %s455 = sadd.s32 %s440, 4
        %s456 = sld [smem:[#allocation4 + %s455]]
        %v457 = vstv %s456
        %v458 = vmul.f32 %v436, %v457
        %v459 = vmul.f32 %v437, %v457
        %v460 = vmul.f32 %v438, %v457
        %v461 = vmul.f32 %v439, %v457
        %s462 = sadd.s32 %s440, 1
        %s463 = sld [smem:[#allocation4 + %s462]]
        %s464 = smul.f32 %s463, 0.886227
        %v465 = vstv %s464
        %v466 = vadd.f32 %v458, %v465
        %v467 = vadd.f32 %v459, %v465
        %v468 = vadd.f32 %v460, %v465
        %v469 = vadd.f32 %v461, %v465
        %s470 = sadd.s32 %s440, 5
        %s471 = sld [smem:[#allocation4 + %s470]]
        %v472 = vstv %s471
        %v473 = vmul.f32 %v436, %v472
        %v474 = vmul.f32 %v437, %v472
        %v475 = vmul.f32 %v438, %v472
        %v476 = vmul.f32 %v439, %v472
        %s477 = sadd.s32 %s440, 2
        %s478 = sld [smem:[#allocation4 + %s477]]
        %s479 = smul.f32 %s478, 0.886227
        %v480 = vstv %s479
        %v481 = vadd.f32 %v473, %v480
        %v482 = vadd.f32 %v474, %v480
        %v483 = vadd.f32 %v475, %v480
        %v484 = vadd.f32 %v476, %v480
        %v485 = vmul.f32 %v318, 1.023328
        %v486 = vmul.f32 %v319, 1.023328
        %v487 = vmul.f32 %v320, 1.023328
        %v488 = vmul.f32 %v321, 1.023328
        %s489 = sadd.s32 %s440, 6
        %s490 = sld [smem:[#allocation4 + %s489]]
        %v491 = vstv %s490
        %v492 = vmul.f32 %v485, %v491
        %v493 = vmul.f32 %v486, %v491
        %v494 = vmul.f32 %v487, %v491
        %v495 = vmul.f32 %v488, %v491
        %v496 = vadd.f32 %v451, %v492
        %v497 = vadd.f32 %v452, %v493
        %v498 = vadd.f32 %v453, %v494
        %v499 = vadd.f32 %v454, %v495
        %s500 = sadd.s32 %s440, 7
        %s501 = sld [smem:[#allocation4 + %s500]]
        %v502 = vstv %s501
        %v503 = vmul.f32 %v485, %v502
        %v504 = vmul.f32 %v486, %v502
        %v505 = vmul.f32 %v487, %v502
        %v506 = vmul.f32 %v488, %v502
        %v507 = vadd.f32 %v466, %v503
        %v508 = vadd.f32 %v467, %v504
        %v509 = vadd.f32 %v468, %v505
        %v510 = vadd.f32 %v469, %v506
        %s511 = sadd.s32 %s440, 8
        %s512 = sld [smem:[#allocation4 + %s511]]
        %v513 = vstv %s512
        %v514 = vmul.f32 %v485, %v513
        %v515 = vmul.f32 %v486, %v513
        %v516 = vmul.f32 %v487, %v513
        %v517 = vmul.f32 %v488, %v513
        %v518 = vadd.f32 %v481, %v514
        %v519 = vadd.f32 %v482, %v515
        %v520 = vadd.f32 %v483, %v516
        %v521 = vadd.f32 %v484, %v517
        %v522 = vmul.f32 %v308, 1.023328
        %v523 = vmul.f32 %v309, 1.023328
        %v524 = vmul.f32 %v310, 1.023328
        %v525 = vmul.f32 %v311, 1.023328
        %s526 = sadd.s32 %s440, 9
        %s527 = sld [smem:[#allocation4 + %s526]]
        %v528 = vstv %s527
        %v529 = vmul.f32 %v522, %v528
        %v530 = vmul.f32 %v523, %v528
        %v531 = vmul.f32 %v524, %v528
        %v532 = vmul.f32 %v525, %v528
        %v533 = vadd.f32 %v496, %v529
        %v534 = vadd.f32 %v497, %v530
        %v535 = vadd.f32 %v498, %v531
        %v536 = vadd.f32 %v499, %v532
        %s537 = sadd.s32 %s440, 10
        %s538 = sld [smem:[#allocation4 + %s537]]
        %v539 = vstv %s538
        %v540 = vmul.f32 %v522, %v539
        %v541 = vmul.f32 %v523, %v539
        %v542 = vmul.f32 %v524, %v539
        %v543 = vmul.f32 %v525, %v539
        %v544 = vadd.f32 %v507, %v540
        %v545 = vadd.f32 %v508, %v541
        %v546 = vadd.f32 %v509, %v542
        %v547 = vadd.f32 %v510, %v543
        %s548 = sadd.s32 %s440, 11
        %s549 = sld [smem:[#allocation4 + %s548]]
        %v550 = vstv %s549
        %v551 = vmul.f32 %v522, %v550
        %v552 = vmul.f32 %v523, %v550
        %v553 = vmul.f32 %v524, %v550
        %v554 = vmul.f32 %v525, %v550
        %v555 = vadd.f32 %v518, %v551
        %v556 = vadd.f32 %v519, %v552
        %v557 = vadd.f32 %v520, %v553
        %v558 = vadd.f32 %v521, %v554
        %v559 = vmul.f32 %v308, 0.858086
        %v560 = vmul.f32 %v309, 0.858086
        %v561 = vmul.f32 %v310, 0.858086
        %v562 = vmul.f32 %v311, 0.858086
        %v563 = vmul.f32 %v559, %v313
        %v564 = vmul.f32 %v560, %v314
        %v565 = vmul.f32 %v561, %v315
        %v566 = vmul.f32 %v562, %v316
        %s567 = sadd.s32 %s440, 12
        %s568 = sld [smem:[#allocation4 + %s567]]
        %v569 = vstv %s568
        %v570 = vmul.f32 %v563, %v569
        %v571 = vmul.f32 %v564, %v569
        %v572 = vmul.f32 %v565, %v569
        %v573 = vmul.f32 %v566, %v569
        %v574 = vadd.f32 %v533, %v570
        %v575 = vadd.f32 %v534, %v571
        %v576 = vadd.f32 %v535, %v572
        %v577 = vadd.f32 %v536, %v573
        %s578 = sadd.s32 %s440, 13
        %s579 = sld [smem:[#allocation4 + %s578]]
        %v580 = vstv %s579
        %v581 = vmul.f32 %v563, %v580
        %v582 = vmul.f32 %v564, %v580
        %v583 = vmul.f32 %v565, %v580
        %v584 = vmul.f32 %v566, %v580
        %v585 = vadd.f32 %v544, %v581
        %v586 = vadd.f32 %v545, %v582
        %v587 = vadd.f32 %v546, %v583
        %v588 = vadd.f32 %v547, %v584
        %s589 = sadd.s32 %s440, 14
        %s590 = sld [smem:[#allocation4 + %s589]]
        %v591 = vstv %s590
        %v592 = vmul.f32 %v563, %v591
        %v593 = vmul.f32 %v564, %v591
        %v594 = vmul.f32 %v565, %v591
        %v595 = vmul.f32 %v566, %v591
        %v596 = vadd.f32 %v555, %v592
        %v597 = vadd.f32 %v556, %v593
        %v598 = vadd.f32 %v557, %v594
        %v599 = vadd.f32 %v558, %v595
        %v600 = vmul.f32 %v313, 0.858086
        %v601 = vmul.f32 %v314, 0.858086
        %v602 = vmul.f32 %v315, 0.858086
        %v603 = vmul.f32 %v316, 0.858086
        %v604 = vmul.f32 %v600, %v318
        %v605 = vmul.f32 %v601, %v319
        %v606 = vmul.f32 %v602, %v320
        %v607 = vmul.f32 %v603, %v321
        %s608 = sadd.s32 %s440, 15
        %s609 = sld [smem:[#allocation4 + %s608]]
        %v610 = vstv %s609
        %v611 = vmul.f32 %v604, %v610
        %v612 = vmul.f32 %v605, %v610
        %v613 = vmul.f32 %v606, %v610
        %v614 = vmul.f32 %v607, %v610
        %v615 = vadd.f32 %v574, %v611
        %v616 = vadd.f32 %v575, %v612
        %v617 = vadd.f32 %v576, %v613
        %v618 = vadd.f32 %v577, %v614
        %s619 = sadd.s32 %s440, 16
        %s620 = sld [smem:[#allocation4 + %s619]]
        %v621 = vstv %s620
        %v622 = vmul.f32 %v604, %v621
        %v623 = vmul.f32 %v605, %v621
        %v624 = vmul.f32 %v606, %v621
        %v625 = vmul.f32 %v607, %v621
        %v626 = vadd.f32 %v585, %v622
        %v627 = vadd.f32 %v586, %v623
        %v628 = vadd.f32 %v587, %v624
        %v629 = vadd.f32 %v588, %v625
        %s630 = sadd.s32 %s440, 17
        %s631 = sld [smem:[#allocation4 + %s630]]
        %v632 = vstv %s631
        %v633 = vmul.f32 %v604, %v632
        %v634 = vmul.f32 %v605, %v632
        %v635 = vmul.f32 %v606, %v632
        %v636 = vmul.f32 %v607, %v632
        %v637 = vadd.f32 %v596, %v633
        %v638 = vadd.f32 %v597, %v634
        %v639 = vadd.f32 %v598, %v635
        %v640 = vadd.f32 %v599, %v636
        %v641 = vmul.f32 %v318, 0.743125
        %v642 = vmul.f32 %v319, 0.743125
        %v643 = vmul.f32 %v320, 0.743125
        %v644 = vmul.f32 %v321, 0.743125
        %v645 = vmul.f32 %v641, %v318
        %v646 = vmul.f32 %v642, %v319
        %v647 = vmul.f32 %v643, %v320
        %v648 = vmul.f32 %v644, %v321
        %v649 = vsub.f32 %v645, 0.247708
        %v650 = vsub.f32 %v646, 0.247708
        %v651 = vsub.f32 %v647, 0.247708
        %v652 = vsub.f32 %v648, 0.247708
        %s653 = sadd.s32 %s440, 18
        %s654 = sld [smem:[#allocation4 + %s653]]
        %v655 = vstv %s654
        %v656 = vmul.f32 %v649, %v655
        %v657 = vmul.f32 %v650, %v655
        %v658 = vmul.f32 %v651, %v655
        %v659 = vmul.f32 %v652, %v655
        %v660 = vadd.f32 %v615, %v656
        %v661 = vadd.f32 %v616, %v657
        %v662 = vadd.f32 %v617, %v658
        %v663 = vadd.f32 %v618, %v659
        %s664 = sadd.s32 %s440, 19
        %s665 = sld [smem:[#allocation4 + %s664]]
        %v666 = vstv %s665
        %v667 = vmul.f32 %v649, %v666
        %v668 = vmul.f32 %v650, %v666
        %v669 = vmul.f32 %v651, %v666
        %v670 = vmul.f32 %v652, %v666
        %v671 = vadd.f32 %v626, %v667
        %v672 = vadd.f32 %v627, %v668
        %v673 = vadd.f32 %v628, %v669
        %v674 = vadd.f32 %v629, %v670
        %s675 = sadd.s32 %s440, 20
        %s676 = sld [smem:[#allocation4 + %s675]]
        %v677 = vstv %s676
        %v678 = vmul.f32 %v649, %v677
        %v679 = vmul.f32 %v650, %v677
        %v680 = vmul.f32 %v651, %v677
        %v681 = vmul.f32 %v652, %v677
        %v682 = vadd.f32 %v637, %v678
        %v683 = vadd.f32 %v638, %v679
        %v684 = vadd.f32 %v639, %v680
        %v685 = vadd.f32 %v640, %v681
        %v686 = vmul.f32 %v559, %v318
        %v687 = vmul.f32 %v560, %v319
        %v688 = vmul.f32 %v561, %v320
        %v689 = vmul.f32 %v562, %v321
        %s690 = sadd.s32 %s440, 21
        %s691 = sld [smem:[#allocation4 + %s690]]
        %v692 = vstv %s691
        %v693 = vmul.f32 %v686, %v692
        %v694 = vmul.f32 %v687, %v692
        %v695 = vmul.f32 %v688, %v692
        %v696 = vmul.f32 %v689, %v692
        %v697 = vadd.f32 %v660, %v693
        %v698 = vadd.f32 %v661, %v694
        %v699 = vadd.f32 %v662, %v695
        %v700 = vadd.f32 %v663, %v696
        %s701 = sadd.s32 %s440, 22
        %s702 = sld [smem:[#allocation4 + %s701]]
        %v703 = vstv %s702
        %v704 = vmul.f32 %v686, %v703
        %v705 = vmul.f32 %v687, %v703
        %v706 = vmul.f32 %v688, %v703
        %v707 = vmul.f32 %v689, %v703
        %v708 = vadd.f32 %v671, %v704
        %v709 = vadd.f32 %v672, %v705
        %v710 = vadd.f32 %v673, %v706
        %v711 = vadd.f32 %v674, %v707
        %s712 = sadd.s32 %s440, 23
        %s713 = sld [smem:[#allocation4 + %s712]]
        %v714 = vstv %s713
        %v715 = vmul.f32 %v686, %v714
        %v716 = vmul.f32 %v687, %v714
        %v717 = vmul.f32 %v688, %v714
        %v718 = vmul.f32 %v689, %v714
        %v719 = vadd.f32 %v682, %v715
        %v720 = vadd.f32 %v683, %v716
        %v721 = vadd.f32 %v684, %v717
        %v722 = vadd.f32 %v685, %v718
        %v723 = vmul.f32 %v308, %v308
        %v724 = vmul.f32 %v309, %v309
        %v725 = vmul.f32 %v310, %v310
        %v726 = vmul.f32 %v311, %v311
        %v727 = vmul.f32 %v313, %v313
        %v728 = vmul.f32 %v314, %v314
        %v729 = vmul.f32 %v315, %v315
        %v730 = vmul.f32 %v316, %v316
        %v731 = vsub.f32 %v723, %v727
        %v732 = vsub.f32 %v724, %v728
        %v733 = vsub.f32 %v725, %v729
        %v734 = vsub.f32 %v726, %v730
        %v735 = vmul.f32 %v731, 0.429043
        %v736 = vmul.f32 %v732, 0.429043
        %v737 = vmul.f32 %v733, 0.429043
        %v738 = vmul.f32 %v734, 0.429043
        %s739 = sadd.s32 %s440, 24
        %s740 = sld [smem:[#allocation4 + %s739]]
        %v741 = vstv %s740
        %v742 = vmul.f32 %v735, %v741
        %v743 = vmul.f32 %v736, %v741
        %v744 = vmul.f32 %v737, %v741
        %v745 = vmul.f32 %v738, %v741
        %v746 = vadd.f32 %v697, %v742
        %v747 = vadd.f32 %v698, %v743
        %v748 = vadd.f32 %v699, %v744
        %v749 = vadd.f32 %v700, %v745
        %s750 = sadd.s32 %s440, 25
        %s751 = sld [smem:[#allocation4 + %s750]]
        %v752 = vstv %s751
        %v753 = vmul.f32 %v735, %v752
        %v754 = vmul.f32 %v736, %v752
        %v755 = vmul.f32 %v737, %v752
        %v756 = vmul.f32 %v738, %v752
        %v757 = vadd.f32 %v708, %v753
        %v758 = vadd.f32 %v709, %v754
        %v759 = vadd.f32 %v710, %v755
        %v760 = vadd.f32 %v711, %v756
        %s761 = sadd.s32 %s440, 26
        %s762 = sld [smem:[#allocation4 + %s761]]
        %v763 = vstv %s762
        %v764 = vmul.f32 %v735, %v763
        %v765 = vmul.f32 %v736, %v763
        %v766 = vmul.f32 %v737, %v763
        %v767 = vmul.f32 %v738, %v763
        %v768 = vadd.f32 %v719, %v764
        %v769 = vadd.f32 %v720, %v765
        %v770 = vadd.f32 %v721, %v766
        %v771 = vadd.f32 %v722, %v767
        %v772 = vld [vmem:[%s293] sm:$0xff]
        %v773 = vld [vmem:[%s293 + $0x8] sm:$0xff]
        %v774 = vld [vmem:[%s293 + $0x10] sm:$0xff]
        %v775 = vld [vmem:[%s293 + $0x18] sm:$0xff]
        %v776 = vmul.f32 %v772, %v746
        %v777 = vmul.f32 %v773, %v747
        %v778 = vmul.f32 %v774, %v748
        %v779 = vmul.f32 %v775, %v749
        %v780 = vld [vmem:[%s307] sm:$0xff]
        %v781 = vld [vmem:[%s307 + $0x8] sm:$0xff]
        %v782 = vld [vmem:[%s307 + $0x10] sm:$0xff]
        %v783 = vld [vmem:[%s307 + $0x18] sm:$0xff]
        %v784 = vmul.f32 %v780, 0.2
        %v785 = vmul.f32 %v781, 0.2
        %v786 = vmul.f32 %v782, 0.2
        %v787 = vmul.f32 %v783, 0.2
        %v788 = vadd.f32 %v776, %v784
        %v789 = vadd.f32 %v777, %v785
        %v790 = vadd.f32 %v778, %v786
        %v791 = vadd.f32 %v779, %v787
        %v792 = vld [vmem:[%s302] sm:$0xff]
        %v793 = vld [vmem:[%s302 + $0x8] sm:$0xff]
        %v794 = vld [vmem:[%s302 + $0x10] sm:$0xff]
        %v795 = vld [vmem:[%s302 + $0x18] sm:$0xff]
        %v796 = vsub.f32 %v788, %v792
        %v797 = vsub.f32 %v789, %v793
        %v798 = vsub.f32 %v790, %v794
        %v799 = vsub.f32 %v791, %v795
        %v800 = vand.u32 2147483647, %v796
        %v801 = vand.u32 2147483647, %v797
        %v802 = vand.u32 2147483647, %v798
        %v803 = vand.u32 2147483647, %v799
        %s804 = scalar_lea.vmem %s293, 32
        %v805 = vld [vmem:[%s804] sm:$0xff]
        %v806 = vld [vmem:[%s804 + $0x8] sm:$0xff]
        %v807 = vld [vmem:[%s804 + $0x10] sm:$0xff]
        %v808 = vld [vmem:[%s804 + $0x18] sm:$0xff]
        %v809 = vmul.f32 %v805, %v757
        %v810 = vmul.f32 %v806, %v758
        %v811 = vmul.f32 %v807, %v759
        %v812 = vmul.f32 %v808, %v760
        %s813 = scalar_lea.vmem %s307, 32
        %v814 = vld [vmem:[%s813] sm:$0xff]
        %v815 = vld [vmem:[%s813 + $0x8] sm:$0xff]
        %v816 = vld [vmem:[%s813 + $0x10] sm:$0xff]
        %v817 = vld [vmem:[%s813 + $0x18] sm:$0xff]
        %v818 = vmul.f32 %v814, 0.2
        %v819 = vmul.f32 %v815, 0.2
        %v820 = vmul.f32 %v816, 0.2
        %v821 = vmul.f32 %v817, 0.2
        %v822 = vadd.f32 %v809, %v818
        %v823 = vadd.f32 %v810, %v819
        %v824 = vadd.f32 %v811, %v820
        %v825 = vadd.f32 %v812, %v821
        %s826 = scalar_lea.vmem %s302, 32
        %v827 = vld [vmem:[%s826] sm:$0xff]
        %v828 = vld [vmem:[%s826 + $0x8] sm:$0xff]
        %v829 = vld [vmem:[%s826 + $0x10] sm:$0xff]
        %v830 = vld [vmem:[%s826 + $0x18] sm:$0xff]
        %v831 = vsub.f32 %v822, %v827
        %v832 = vsub.f32 %v823, %v828
        %v833 = vsub.f32 %v824, %v829
        %v834 = vsub.f32 %v825, %v830
        %v835 = vand.u32 2147483647, %v831
        %v836 = vand.u32 2147483647, %v832
        %v837 = vand.u32 2147483647, %v833
        %v838 = vand.u32 2147483647, %v834
        %v839 = vadd.f32 %v800, %v835
        %v840 = vadd.f32 %v801, %v836
        %v841 = vadd.f32 %v802, %v837
        %v842 = vadd.f32 %v803, %v838
        %s843 = scalar_lea.vmem %s293, 64
        %v844 = vld [vmem:[%s843] sm:$0xff]
        %v845 = vld [vmem:[%s843 + $0x8] sm:$0xff]
        %v846 = vld [vmem:[%s843 + $0x10] sm:$0xff]
        %v847 = vld [vmem:[%s843 + $0x18] sm:$0xff]
        %v848 = vmul.f32 %v844, %v768
        %v849 = vmul.f32 %v845, %v769
        %v850 = vmul.f32 %v846, %v770
        %v851 = vmul.f32 %v847, %v771
        %s852 = scalar_lea.vmem %s307, 64
        %v853 = vld [vmem:[%s852] sm:$0xff]
        %v854 = vld [vmem:[%s852 + $0x8] sm:$0xff]
        %v855 = vld [vmem:[%s852 + $0x10] sm:$0xff]
        %v856 = vld [vmem:[%s852 + $0x18] sm:$0xff]
        %v857 = vmul.f32 %v853, 0.2
        %v858 = vmul.f32 %v854, 0.2
        %v859 = vmul.f32 %v855, 0.2
        %v860 = vmul.f32 %v856, 0.2
        %v861 = vadd.f32 %v848, %v857
        %v862 = vadd.f32 %v849, %v858
        %v863 = vadd.f32 %v850, %v859
        %v864 = vadd.f32 %v851, %v860
        %s865 = scalar_lea.vmem %s302, 64
        %v866 = vld [vmem:[%s865] sm:$0xff]
        %v867 = vld [vmem:[%s865 + $0x8] sm:$0xff]
        %v868 = vld [vmem:[%s865 + $0x10] sm:$0xff]
        %v869 = vld [vmem:[%s865 + $0x18] sm:$0xff]
        %v870 = vsub.f32 %v861, %v866
        %v871 = vsub.f32 %v862, %v867
        %v872 = vsub.f32 %v863, %v868
        %v873 = vsub.f32 %v864, %v869
        %v874 = vand.u32 2147483647, %v870
        %v875 = vand.u32 2147483647, %v871
        %v876 = vand.u32 2147483647, %v872
        %v877 = vand.u32 2147483647, %v873
        %v878 = vadd.f32 %v839, %v874
        %v879 = vadd.f32 %v840, %v875
        %v880 = vadd.f32 %v841, %v876
        %v881 = vadd.f32 %v842, %v877
        %v882 = vld [vmem:[#allocation2] sm:$0xff]
        %v883 = vld [vmem:[#allocation2 + $0x8] sm:$0xff]
        %v884 = vld [vmem:[#allocation2 + $0x10] sm:$0xff]
        %v885 = vld [vmem:[#allocation2 + $0x18] sm:$0xff]
        %v886 = vadd.f32 %v882, %v878
        %v887 = vadd.f32 %v883, %v879
        %v888 = vadd.f32 %v884, %v880
        %v889 = vadd.f32 %v885, %v881
        %890 = vst [vmem:[#allocation2] sm:$0xff] %v886
        %891 = vst [vmem:[#allocation2 + $0x8] sm:$0xff] %v887
        %892 = vst [vmem:[#allocation2 + $0x10] sm:$0xff] %v888
        %893 = vst [vmem:[#allocation2 + $0x18] sm:$0xff] %v889
        %p894 = scmp.eq.s32.totalorder %s34, 1
        // Predicated region
        $region37: #{sh_rendering_with_phongspecular_loss.1} parent=31 // pred_check
          %p895 = pneg %p894
        $region38: #{sh_rendering_with_phongspecular_loss.1} parent=31 // pred_check_branch
          %897 = sbr.rel (%p895) target = $region40
        $region39: #{sh_rendering_with_phongspecular_loss.1} parent=31 // pred_region
          %v898 = vld [vmem:[#allocation2] sm:$0xff]
          %v899 = vld [vmem:[#allocation2 + $0x8] sm:$0xff]
          %v900 = vld [vmem:[#allocation2 + $0x10] sm:$0xff]
          %v901 = vld [vmem:[#allocation2 + $0x18] sm:$0xff]
          %v902 = vadd.f32 %v898, %v899
          %v903 = vadd.f32 %v902, %v900
          %v904 = vadd.f32 %v903, %v901
          %905 = vadd.xlane.f32.xlu0 %v904
          %v906 = vpop.xlane.xlu0 %905
          %v907 = vrot.slane %v906, 4
          %v908 = vadd.f32 %v906, %v907
          %v909 = vrot.slane %v908, 2
          %v910 = vadd.f32 %v908, %v909
          %v911 = vrot.slane %v910, 1
          %v912 = vadd.f32 %v910, %v911
          %vm913 = vcmask 0
          %914 = vst.msk [vmem:[#allocation6] sm:$0x1] %vm913, %v912
        $region40: #{sh_rendering_with_phongspecular_loss.1} parent=31 // pred_fallthru
          _
        %p915 = scmp.lt.s32.totalorder %s33, 0
        %s916 = scalar_select %p915, %s33, 0
        %s917 = smul.addr %s916, 4
        %s918 = smul.addr %s917, 8
        %s919 = scalar_lea.vmem %s6, %s918
        // Predicated region
        $region41: #{sh_rendering_with_phongspecular_loss.1} parent=31 // pred_check
          %p920 = pneg %p143
        $region42: #{sh_rendering_with_phongspecular_loss.1} parent=31 // pred_check_branch
          %922 = sbr.rel (%p920) target = $region44
        $region43: #{sh_rendering_with_phongspecular_loss.1} parent=31 // pred_region
          %s924 = ssub.s32 16, 16
          %925 = vsyncadd [#allocation7], %s924
          %s926 = smul.addr %s33, 16
          %s927 = scalar_lea.hbm %s5, %s926
          %s929 = sshll.u32 [#allocation6], 4
          %s930 = int_to_ptr.vmem [resolvable:$true] %s929
          %932 = dma.vmem_to_hbm [thread:$0]  %s930, 16, %s927, [#allocation7]
        $region44: #{sh_rendering_with_phongspecular_loss.1} parent=31 // pred_fallthru
          _
        // Predicated region
        $region45: #{sh_rendering_with_phongspecular_loss.1} parent=31 // pred_check
          %p933 = pneg %p169
        $region46: #{sh_rendering_with_phongspecular_loss.1} parent=31 // pred_check_branch
          %935 = sbr.rel (%p933) target = $region48
        $region47: #{sh_rendering_with_phongspecular_loss.1} parent=31 // pred_region
          _
        $region48: #{sh_rendering_with_phongspecular_loss.1} parent=31 // pred_fallthru
          _
        // Predicated region
        $region49: #{sh_rendering_with_phongspecular_loss.1} parent=31 // pred_check
          %p936 = pneg %p143
        $region50: #{sh_rendering_with_phongspecular_loss.1} parent=31 // pred_check_branch
          %938 = sbr.rel (%p936) target = $region52
        $region51: #{sh_rendering_with_phongspecular_loss.1} parent=31 // pred_region
          %939 = dma.done [#allocation7], 16
        $region52: #{sh_rendering_with_phongspecular_loss.1} parent=31 // pred_fallthru
          _
        // Predicated region
        $region53: #{sh_rendering_with_phongspecular_loss.1} parent=31 // pred_check
          %p940 = pneg %p169
        $region54: #{sh_rendering_with_phongspecular_loss.1} parent=31 // pred_check_branch
          %942 = sbr.rel (%p940) target = $region56
        $region55: #{sh_rendering_with_phongspecular_loss.1} parent=31 // pred_region
          %p943 = scmp.lt.s32.totalorder %s33, 0
          %s944 = scalar_select %p943, %s33, 0
          %s945 = smul.addr %s944, 4
          %s946 = smul.addr %s945, 8
          %s947 = scalar_lea.vmem %s6, %s946
        $region56: #{sh_rendering_with_phongspecular_loss.1} parent=31 // pred_fallthru
          _
      $region32: #{sh_rendering_with_phongspecular_loss.1} parent=5 // pred_fallthru
        _
      %p948 = scmp.le.s32.totalorder 2, %s24
      // Predicated region
      $region57: #{sh_rendering_with_phongspecular_loss.1} parent=5 // pred_check
        %p949 = pneg %p948
      $region58: #{sh_rendering_with_phongspecular_loss.1} parent=5 // pred_check_branch
        %951 = sbr.rel (%p949) target = $region60
      $region59: #{sh_rendering_with_phongspecular_loss.1} parent=5 // pred_region
        %s952 = ssub.s32 %s24, 2
      $region60: #{sh_rendering_with_phongspecular_loss.1} parent=5 // pred_fallthru
        _
    $region6: #{sh_rendering_with_phongspecular_loss.1} parent=1 // loop_footer
      %s28 = sadd.s32 1, %s24
    $region7: #{sh_rendering_with_phongspecular_loss.1} parent=1 // loop_footer_branch
      %23 = sbr.rel target = $region3
    $region8: #{sh_rendering_with_phongspecular_loss.1} parent=1 // loop_exit
      _
    %953 = vsyncpa [#allocation7], 1
    %s954 = scalar_lea.sflag [#allocation7], 1
    %955 = vsyncpa %s954, 1

</llo_original>
